<compile_context>
chip_gen: v7x
topology: tpu7x:2x2x1
jax: 0.10.0
libtpu: 0.0.40
codegen_flags: <defaults>
</compile_context>

<pallas_src>
import jax
import jax.numpy as jnp
from jax import lax
from jax.experimental import pallas as pl
from jax.experimental.pallas import tpu as pltpu

# ---------------- model hyper-parameters (small, consistent with the module) ---
VOCAB = 50          # input_size  (len(word2int) + 1)
EMBED = 32          # embedding_dim
HIDDEN = 32         # hidden_size
N_LAYERS = 2        # n_layers
OUT = 1             # output_size
BATCH = 2
SEQ = 8

VOCAB_PAD = ((VOCAB + 7) // 8) * 8   # 56: sublane-aligned vocab rows in pack0


# ---------------- fused Pallas kernel ------------------------------------------
def _lstm_cell(x_proj, h, c, whh_bf16):
    """One LSTM cell step; x_proj already holds x @ W_ih + (b_ih + b_hh), fp32."""
    H = h.shape[1]
    gates = x_proj + jnp.dot(h.astype(jnp.bfloat16), whh_bf16,
                             preferred_element_type=jnp.float32)   # (B, 4H) fp32
    # full-width (4H = 128 lane) EUP ops, then slice.  PyTorch gate order: i,f,g,o
    sig_all = jax.nn.sigmoid(gates)
    tanh_all = jnp.tanh(gates)
    i_g = sig_all[:, 0 * H:1 * H]
    f_g = sig_all[:, 1 * H:2 * H]
    g_g = tanh_all[:, 2 * H:3 * H]
    o_g = sig_all[:, 3 * H:4 * H]
    c_new = f_g * c + i_g * g_g
    h_new = o_g * jnp.tanh(c_new)
    return h_new, c_new


def _fused_forward_kernel(tok_ref, pk0_ref, pk1_ref, h0_ref, c0_ref,
                          sig_ref, hN_ref, cN_ref):
    """Fused forward.

    tok_ref : (T*B, 1) int32  time-major flattened tokens (row t*B+b -> token[b,t])
    pk0_ref : (VP+H+8, 4H)    rows [0:VP)      = embed @ wih0 (zero-padded to VP rows)
                              rows [VP:VP+H)   = whh0
                              row  VP+H        = b0 (= b_ih0 + b_hh0)
    pk1_ref : (2H+16, 4H)     rows [0:H)=wih1, [H:2H)=whh1, row 2H = b1,
                              row 2H+8: lanes [0:H)=fc_w, lane H = fc_b
    h0/c0   : (n_layers, B, H)   (aliased to hN/cN outputs)
    outputs : sig (B, 1), hN / cN (n_layers, B, H)
    """
    TB = tok_ref.shape[0]
    B = h0_ref.shape[1]
    H = h0_ref.shape[2]
    T = TB // B
    VP = pk0_ref.shape[0] - H - 8          # padded vocab rows

    # read initial states up-front (h0/c0 alias the hN/cN output buffers)
    h0_l0 = h0_ref[0]
    c0_l0 = c0_ref[0]
    h0_l1 = h0_ref[1]
    c0_l1 = c0_ref[1]

    # ---- embedding folded into layer-0 projection: onehot @ (embed@wih0) + b0 ----
    # Note: out-of-range token ids (>= VOCAB) silently map to a zero row.
    lane_ids = lax.broadcasted_iota(jnp.int32, (TB, VP), 1)
    onehot = (lane_ids == tok_ref[...]).astype(jnp.bfloat16)           # (T*B, VP)
    w0e = pk0_ref[0:VP, :].astype(jnp.bfloat16)                        # (VP, 4H)
    b0 = pk0_ref[VP + H:VP + H + 1, :]                                 # (1, 4H) fp32
    xw0 = jnp.dot(onehot, w0e, preferred_element_type=jnp.float32) + b0  # (T*B, 4H)

    # ---- layer 0 recurrence (fully unrolled, T static) ---------------------------
    whh0 = pk0_ref[VP:VP + H, :].astype(jnp.bfloat16)                  # (H, 4H)
    h = h0_l0
    c = c0_l0
    ys = []                                   # layer-0 hidden per step (stays in vregs)
    for t in range(T):
        h, c = _lstm_cell(xw0[t * B:(t + 1) * B, :], h, c, whh0)
        ys.append(h)
    hN_ref[0] = h
    cN_ref[0] = c
    # TODO(synk): inter-layer LSTM dropout and self.dropout are identity (eval mode);
    # training-mode RNG dropout not implemented.

    # ---- layer 1: ONE batched input projection off the serial h-chain ------------
    wih1 = pk1_ref[0:H, :].astype(jnp.bfloat16)                        # (H, 4H)
    whh1 = pk1_ref[H:2 * H, :].astype(jnp.bfloat16)                    # (H, 4H)
    b1 = pk1_ref[2 * H:2 * H + 1, :]                                   # (1, 4H) fp32
    ys_stack = jnp.concatenate(ys, axis=0).astype(jnp.bfloat16)        # (T*B, H)
    xw1 = jnp.dot(ys_stack, wih1, preferred_element_type=jnp.float32) + b1  # (T*B, 4H)

    h = h0_l1
    c = c0_l1
    for t in range(T):                        # fully unrolled
        h, c = _lstm_cell(xw1[t * B:(t + 1) * B, :], h, c, whh1)
    hN_ref[1] = h
    cN_ref[1] = c

    # ---- fc + sigmoid on LAST timestep only (== view(B,-1)[:, -1]) ---------------
    # width-1 output: VPU multiply + lane reduce instead of an MXU push at the tail
    fc_row = pk1_ref[2 * H + 8:2 * H + 9, :]                           # (1, 4H) fp32
    fc_w = fc_row[:, 0:H]                                              # (1, H)
    fc_b = fc_row[:, H:H + 1]                                          # (1, 1)
    logit = jnp.sum(h * fc_w, axis=-1, keepdims=True) + fc_b           # (B, 1)
    sig_ref[...] = jax.nn.sigmoid(logit)


# ---------------- wrapper around pallas_call ------------------------------------
def _vmem_spec():
    return pl.BlockSpec(memory_space=pltpu.MemorySpace.VMEM)


def pack_params(params):
    """Fold embed into wih0 and stack each layer's weights into one VMEM block."""
    H = HIDDEN
    # layer 0: [embed @ wih0 (padded to VOCAB_PAD rows); whh0; b0]
    w0e = jnp.dot(params["embed"], params["wih0"])                     # (V, 4H)
    pack0 = jnp.zeros((VOCAB_PAD + H + 8, 4 * H), jnp.float32)
    pack0 = pack0.at[0:VOCAB, :].set(w0e)
    pack0 = pack0.at[VOCAB_PAD:VOCAB_PAD + H, :].set(params["whh0"])
    pack0 = pack0.at[VOCAB_PAD + H, :].set(params["b0"][0])

    # layer 1: [wih1; whh1; b1; fc row]
    pack1 = jnp.zeros((2 * H + 16, 4 * H), jnp.float32)
    pack1 = pack1.at[0:H, :].set(params["wih1"])
    pack1 = pack1.at[H:2 * H, :].set(params["whh1"])
    pack1 = pack1.at[2 * H, :].set(params["b1"][0])
    fc_row = jnp.zeros((4 * H,), jnp.float32)
    fc_row = fc_row.at[0:H].set(params["fc_w"][:, 0])
    fc_row = fc_row.at[H].set(params["fc_b"][0, 0])
    pack1 = pack1.at[2 * H + 8, :].set(fc_row)
    return pack0, pack1


@jax.jit
def sentiment_lstm_forward(packed, input_words, h):
    """packed = pack_params(params); input_words: (B, T) int32; h = (h0, c0)."""
    pack0, pack1 = packed
    h0_all, c0_all = h
    B, T = input_words.shape

    # time-major flattened token column: row t*B + b  <->  token[b, t]
    tok_tm = jnp.transpose(input_words, (1, 0)).reshape(T * B, 1).astype(jnp.int32)

    sig, h_n, c_n = pl.pallas_call(
        _fused_forward_kernel,
        out_shape=(jax.ShapeDtypeStruct((B, OUT), jnp.float32),
                   jax.ShapeDtypeStruct((N_LAYERS, B, HIDDEN), jnp.float32),
                   jax.ShapeDtypeStruct((N_LAYERS, B, HIDDEN), jnp.float32)),
        in_specs=[_vmem_spec()] * 5,
        out_specs=(_vmem_spec(), _vmem_spec(), _vmem_spec()),
        input_output_aliases={3: 1, 4: 2},   # h0 -> hN, c0 -> cN
    )(tok_tm, pack0, pack1, h0_all, c0_all)

    return sig[:, 0], (h_n, c_n)


# ---------------- parameter construction (deterministic) ------------------------
def init_params(key):
    keys = jax.random.split(key, 4 + 3 * N_LAYERS)
    params = {}
    params["embed"] = jax.random.normal(keys[0], (VOCAB, EMBED), jnp.float32) * 0.1
    din = EMBED
    k = 1
    scale = 1.0 / jnp.sqrt(HIDDEN)
    for l in range(N_LAYERS):
        params[f"wih{l}"] = jax.random.uniform(
            keys[k], (din, 4 * HIDDEN), jnp.float32, -scale, scale); k += 1
        params[f"whh{l}"] = jax.random.uniform(
            keys[k], (HIDDEN, 4 * HIDDEN), jnp.float32, -scale, scale); k += 1
        # b = b_ih + b_hh (only the sum matters)
        params[f"b{l}"] = jax.random.uniform(
            keys[k], (1, 4 * HIDDEN), jnp.float32, -scale, scale); k += 1
        din = HIDDEN
    params["fc_w"] = jax.random.uniform(keys[k], (HIDDEN, OUT), jnp.float32, -scale, scale); k += 1
    params["fc_b"] = jax.random.uniform(keys[k], (1, OUT), jnp.float32, -scale, scale)
    return params


if __name__ == "__main__":
    key = jax.random.PRNGKey(0)
    pkey, dkey = jax.random.split(key)

    params = init_params(pkey)
    packed = pack_params(params)           # embed@wih0 fold + weight packing (once)

    tokens = jax.random.randint(dkey, (BATCH, SEQ), 0, VOCAB, dtype=jnp.int32)
    assert int(jnp.max(tokens)) < VOCAB     # nn.Embedding would error on OOB ids
    h0 = (jnp.zeros((N_LAYERS, BATCH, HIDDEN), jnp.float32),
          jnp.zeros((N_LAYERS, BATCH, HIDDEN), jnp.float32))

    sig_out, (hN, cN) = sentiment_lstm_forward(packed, tokens, h0)
    jax.block_until_ready((sig_out, hN, cN))

    assert sig_out.shape == (BATCH,)
    assert hN.shape == (N_LAYERS, BATCH, HIDDEN)
    assert cN.shape == (N_LAYERS, BATCH, HIDDEN)
    assert bool(jnp.all(jnp.isfinite(sig_out)))
    assert bool(jnp.all(jnp.isfinite(hN))) and bool(jnp.all(jnp.isfinite(cN)))
    print("KERNEL_OK")
</pallas_src>

<mosaic_0001>
module attributes {stable_mosaic.version = 11 : i64} {
  func.func @_fused_forward_kernel(%arg0: memref<16x1xi32, #tpu.memory_space<vmem>>, %arg1: memref<96x128xf32, #tpu.memory_space<vmem>>, %arg2: memref<80x128xf32, #tpu.memory_space<vmem>>, %arg3: memref<2x2x32xf32, #tpu.memory_space<vmem>>, %arg4: memref<2x2x32xf32, #tpu.memory_space<vmem>>, %arg5: memref<2x1xf32, #tpu.memory_space<vmem>>, %arg6: memref<2x2x32xf32, #tpu.memory_space<vmem>>, %arg7: memref<2x2x32xf32, #tpu.memory_space<vmem>>) attributes {dimension_semantics = [], scalar_prefetch = 0 : i64, scratch_operands = 0 : i64, tpu.core_type = #tpu.core_type<tc>} {
    %c0 = arith.constant 0 : index
    %c0_0 = arith.constant 0 : index
    %c0_1 = arith.constant 0 : index
    %0 = vector.load %arg3[%c0, %c0_0, %c0_1] : memref<2x2x32xf32, #tpu.memory_space<vmem>>, vector<1x2x32xf32>
    %1 = vector.shape_cast %0 : vector<1x2x32xf32> to vector<2x32xf32>
    %c0_2 = arith.constant 0 : index
    %c0_3 = arith.constant 0 : index
    %c0_4 = arith.constant 0 : index
    %2 = vector.load %arg4[%c0_2, %c0_3, %c0_4] : memref<2x2x32xf32, #tpu.memory_space<vmem>>, vector<1x2x32xf32>
    %3 = vector.shape_cast %2 : vector<1x2x32xf32> to vector<2x32xf32>
    %c1 = arith.constant 1 : index
    %c0_5 = arith.constant 0 : index
    %c0_6 = arith.constant 0 : index
    %4 = vector.load %arg3[%c1, %c0_5, %c0_6] : memref<2x2x32xf32, #tpu.memory_space<vmem>>, vector<1x2x32xf32>
    %5 = vector.shape_cast %4 : vector<1x2x32xf32> to vector<2x32xf32>
    %c1_7 = arith.constant 1 : index
    %c0_8 = arith.constant 0 : index
    %c0_9 = arith.constant 0 : index
    %6 = vector.load %arg4[%c1_7, %c0_8, %c0_9] : memref<2x2x32xf32, #tpu.memory_space<vmem>>, vector<1x2x32xf32>
    %7 = vector.shape_cast %6 : vector<1x2x32xf32> to vector<2x32xf32>
    %8 = tpu.iota {dimensions = array<i32: 1>} : vector<16x56xi32>
    %c0_10 = arith.constant 0 : index
    %c0_11 = arith.constant 0 : index
    %9 = vector.load %arg0[%c0_10, %c0_11] : memref<16x1xi32, #tpu.memory_space<vmem>>, vector<16x1xi32>
    %10 = vector.broadcast %9 : vector<16x1xi32> to vector<16x56xi32>
    %11 = arith.cmpi eq, %8, %10 : vector<16x56xi32>
    %12 = arith.extui %11 : vector<16x56xi1> to vector<16x56xi32>
    %13 = arith.sitofp %12 : vector<16x56xi32> to vector<16x56xf32>
    %14 = arith.truncf %13 : vector<16x56xf32> to vector<16x56xbf16>
    %c0_12 = arith.constant 0 : index
    %c0_13 = arith.constant 0 : index
    %15 = vector.load %arg1[%c0_12, %c0_13] : memref<96x128xf32, #tpu.memory_space<vmem>>, vector<56x128xf32>
    %16 = arith.truncf %15 : vector<56x128xf32> to vector<56x128xbf16>
    %c88 = arith.constant 88 : index
    %c0_14 = arith.constant 0 : index
    %17 = vector.load %arg1[%c88, %c0_14] : memref<96x128xf32, #tpu.memory_space<vmem>>, vector<1x128xf32>
    %cst = arith.constant dense<0.000000e+00> : vector<16x128xf32>
    %18 = tpu.matmul %14, %16, %cst {dimension_numbers = #tpu.dot_dimension_numbers<[1], [0], [0], [1], [0, 0, 1, 1], [], []>} : vector<16x56xbf16>, vector<56x128xbf16>, vector<16x128xf32> -> vector<16x128xf32>
    %19 = vector.broadcast %17 : vector<1x128xf32> to vector<16x128xf32>
    %20 = arith.addf %18, %19 : vector<16x128xf32>
    %c56 = arith.constant 56 : index
    %c0_15 = arith.constant 0 : index
    %21 = vector.load %arg1[%c56, %c0_15] : memref<96x128xf32, #tpu.memory_space<vmem>>, vector<32x128xf32>
    %22 = arith.truncf %21 : vector<32x128xf32> to vector<32x128xbf16>
    %23 = vector.extract_strided_slice %20 {offsets = [0, 0], sizes = [2, 128], strides = [1, 1]} : vector<16x128xf32> to vector<2x128xf32>
    %24 = arith.truncf %1 : vector<2x32xf32> to vector<2x32xbf16>
    %cst_16 = arith.constant dense<0.000000e+00> : vector<2x128xf32>
    %25 = tpu.matmul %24, %22, %cst_16 {dimension_numbers = #tpu.dot_dimension_numbers<[1], [0], [0], [1], [0, 0, 1, 1], [], []>} : vector<2x32xbf16>, vector<32x128xbf16>, vector<2x128xf32> -> vector<2x128xf32>
    %26 = arith.addf %23, %25 : vector<2x128xf32>
    %27 = arith.negf %26 : vector<2x128xf32>
    %28 = math.exp %27 : vector<2x128xf32>
    %cst_17 = arith.constant 1.000000e+00 : f32
    %29 = vector.broadcast %cst_17 : f32 to vector<2x128xf32>
    %30 = arith.addf %29, %28 : vector<2x128xf32>
    %31 = arith.divf %29, %30 : vector<2x128xf32>
    %32 = math.tanh %26 : vector<2x128xf32>
    %33 = vector.extract_strided_slice %31 {offsets = [0, 0], sizes = [2, 32], strides = [1, 1]} : vector<2x128xf32> to vector<2x32xf32>
    %34 = vector.extract_strided_slice %31 {offsets = [0, 32], sizes = [2, 32], strides = [1, 1]} : vector<2x128xf32> to vector<2x32xf32>
    %35 = vector.extract_strided_slice %32 {offsets = [0, 64], sizes = [2, 32], strides = [1, 1]} : vector<2x128xf32> to vector<2x32xf32>
    %36 = vector.extract_strided_slice %31 {offsets = [0, 96], sizes = [2, 32], strides = [1, 1]} : vector<2x128xf32> to vector<2x32xf32>
    %37 = arith.mulf %34, %3 : vector<2x32xf32>
    %38 = arith.mulf %33, %35 : vector<2x32xf32>
    %39 = arith.addf %37, %38 : vector<2x32xf32>
    %40 = math.tanh %39 : vector<2x32xf32>
    %41 = arith.mulf %36, %40 : vector<2x32xf32>
    %42 = vector.extract_strided_slice %20 {offsets = [2, 0], sizes = [2, 128], strides = [1, 1]} : vector<16x128xf32> to vector<2x128xf32>
    %43 = arith.truncf %41 : vector<2x32xf32> to vector<2x32xbf16>
    %cst_18 = arith.constant dense<0.000000e+00> : vector<2x128xf32>
    %44 = tpu.matmul %43, %22, %cst_18 {dimension_numbers = #tpu.dot_dimension_numbers<[1], [0], [0], [1], [0, 0, 1, 1], [], []>} : vector<2x32xbf16>, vector<32x128xbf16>, vector<2x128xf32> -> vector<2x128xf32>
    %45 = arith.addf %42, %44 : vector<2x128xf32>
    %46 = arith.negf %45 : vector<2x128xf32>
    %47 = math.exp %46 : vector<2x128xf32>
    %cst_19 = arith.constant 1.000000e+00 : f32
    %48 = vector.broadcast %cst_19 : f32 to vector<2x128xf32>
    %49 = arith.addf %48, %47 : vector<2x128xf32>
    %50 = arith.divf %48, %49 : vector<2x128xf32>
    %51 = math.tanh %45 : vector<2x128xf32>
    %52 = vector.extract_strided_slice %50 {offsets = [0, 0], sizes = [2, 32], strides = [1, 1]} : vector<2x128xf32> to vector<2x32xf32>
    %53 = vector.extract_strided_slice %50 {offsets = [0, 32], sizes = [2, 32], strides = [1, 1]} : vector<2x128xf32> to vector<2x32xf32>
    %54 = vector.extract_strided_slice %51 {offsets = [0, 64], sizes = [2, 32], strides = [1, 1]} : vector<2x128xf32> to vector<2x32xf32>
    %55 = vector.extract_strided_slice %50 {offsets = [0, 96], sizes = [2, 32], strides = [1, 1]} : vector<2x128xf32> to vector<2x32xf32>
    %56 = arith.mulf %53, %39 : vector<2x32xf32>
    %57 = arith.mulf %52, %54 : vector<2x32xf32>
    %58 = arith.addf %56, %57 : vector<2x32xf32>
    %59 = math.tanh %58 : vector<2x32xf32>
    %60 = arith.mulf %55, %59 : vector<2x32xf32>
    %61 = vector.extract_strided_slice %20 {offsets = [4, 0], sizes = [2, 128], strides = [1, 1]} : vector<16x128xf32> to vector<2x128xf32>
    %62 = arith.truncf %60 : vector<2x32xf32> to vector<2x32xbf16>
    %cst_20 = arith.constant dense<0.000000e+00> : vector<2x128xf32>
    %63 = tpu.matmul %62, %22, %cst_20 {dimension_numbers = #tpu.dot_dimension_numbers<[1], [0], [0], [1], [0, 0, 1, 1], [], []>} : vector<2x32xbf16>, vector<32x128xbf16>, vector<2x128xf32> -> vector<2x128xf32>
    %64 = arith.addf %61, %63 : vector<2x128xf32>
    %65 = arith.negf %64 : vector<2x128xf32>
    %66 = math.exp %65 : vector<2x128xf32>
    %cst_21 = arith.constant 1.000000e+00 : f32
    %67 = vector.broadcast %cst_21 : f32 to vector<2x128xf32>
    %68 = arith.addf %67, %66 : vector<2x128xf32>
    %69 = arith.divf %67, %68 : vector<2x128xf32>
    %70 = math.tanh %64 : vector<2x128xf32>
    %71 = vector.extract_strided_slice %69 {offsets = [0, 0], sizes = [2, 32], strides = [1, 1]} : vector<2x128xf32> to vector<2x32xf32>
    %72 = vector.extract_strided_slice %69 {offsets = [0, 32], sizes = [2, 32], strides = [1, 1]} : vector<2x128xf32> to vector<2x32xf32>
    %73 = vector.extract_strided_slice %70 {offsets = [0, 64], sizes = [2, 32], strides = [1, 1]} : vector<2x128xf32> to vector<2x32xf32>
    %74 = vector.extract_strided_slice %69 {offsets = [0, 96], sizes = [2, 32], strides = [1, 1]} : vector<2x128xf32> to vector<2x32xf32>
    %75 = arith.mulf %72, %58 : vector<2x32xf32>
    %76 = arith.mulf %71, %73 : vector<2x32xf32>
    %77 = arith.addf %75, %76 : vector<2x32xf32>
    %78 = math.tanh %77 : vector<2x32xf32>
    %79 = arith.mulf %74, %78 : vector<2x32xf32>
    %80 = vector.extract_strided_slice %20 {offsets = [6, 0], sizes = [2, 128], strides = [1, 1]} : vector<16x128xf32> to vector<2x128xf32>
    %81 = arith.truncf %79 : vector<2x32xf32> to vector<2x32xbf16>
    %cst_22 = arith.constant dense<0.000000e+00> : vector<2x128xf32>
    %82 = tpu.matmul %81, %22, %cst_22 {dimension_numbers = #tpu.dot_dimension_numbers<[1], [0], [0], [1], [0, 0, 1, 1], [], []>} : vector<2x32xbf16>, vector<32x128xbf16>, vector<2x128xf32> -> vector<2x128xf32>
    %83 = arith.addf %80, %82 : vector<2x128xf32>
    %84 = arith.negf %83 : vector<2x128xf32>
    %85 = math.exp %84 : vector<2x128xf32>
    %cst_23 = arith.constant 1.000000e+00 : f32
    %86 = vector.broadcast %cst_23 : f32 to vector<2x128xf32>
    %87 = arith.addf %86, %85 : vector<2x128xf32>
    %88 = arith.divf %86, %87 : vector<2x128xf32>
    %89 = math.tanh %83 : vector<2x128xf32>
    %90 = vector.extract_strided_slice %88 {offsets = [0, 0], sizes = [2, 32], strides = [1, 1]} : vector<2x128xf32> to vector<2x32xf32>
    %91 = vector.extract_strided_slice %88 {offsets = [0, 32], sizes = [2, 32], strides = [1, 1]} : vector<2x128xf32> to vector<2x32xf32>
    %92 = vector.extract_strided_slice %89 {offsets = [0, 64], sizes = [2, 32], strides = [1, 1]} : vector<2x128xf32> to vector<2x32xf32>
    %93 = vector.extract_strided_slice %88 {offsets = [0, 96], sizes = [2, 32], strides = [1, 1]} : vector<2x128xf32> to vector<2x32xf32>
    %94 = arith.mulf %91, %77 : vector<2x32xf32>
    %95 = arith.mulf %90, %92 : vector<2x32xf32>
    %96 = arith.addf %94, %95 : vector<2x32xf32>
    %97 = math.tanh %96 : vector<2x32xf32>
    %98 = arith.mulf %93, %97 : vector<2x32xf32>
    %99 = vector.extract_strided_slice %20 {offsets = [8, 0], sizes = [2, 128], strides = [1, 1]} : vector<16x128xf32> to vector<2x128xf32>
    %100 = arith.truncf %98 : vector<2x32xf32> to vector<2x32xbf16>
    %cst_24 = arith.constant dense<0.000000e+00> : vector<2x128xf32>
    %101 = tpu.matmul %100, %22, %cst_24 {dimension_numbers = #tpu.dot_dimension_numbers<[1], [0], [0], [1], [0, 0, 1, 1], [], []>} : vector<2x32xbf16>, vector<32x128xbf16>, vector<2x128xf32> -> vector<2x128xf32>
    %102 = arith.addf %99, %101 : vector<2x128xf32>
    %103 = arith.negf %102 : vector<2x128xf32>
    %104 = math.exp %103 : vector<2x128xf32>
    %cst_25 = arith.constant 1.000000e+00 : f32
    %105 = vector.broadcast %cst_25 : f32 to vector<2x128xf32>
    %106 = arith.addf %105, %104 : vector<2x128xf32>
    %107 = arith.divf %105, %106 : vector<2x128xf32>
    %108 = math.tanh %102 : vector<2x128xf32>
    %109 = vector.extract_strided_slice %107 {offsets = [0, 0], sizes = [2, 32], strides = [1, 1]} : vector<2x128xf32> to vector<2x32xf32>
    %110 = vector.extract_strided_slice %107 {offsets = [0, 32], sizes = [2, 32], strides = [1, 1]} : vector<2x128xf32> to vector<2x32xf32>
    %111 = vector.extract_strided_slice %108 {offsets = [0, 64], sizes = [2, 32], strides = [1, 1]} : vector<2x128xf32> to vector<2x32xf32>
    %112 = vector.extract_strided_slice %107 {offsets = [0, 96], sizes = [2, 32], strides = [1, 1]} : vector<2x128xf32> to vector<2x32xf32>
    %113 = arith.mulf %110, %96 : vector<2x32xf32>
    %114 = arith.mulf %109, %111 : vector<2x32xf32>
    %115 = arith.addf %113, %114 : vector<2x32xf32>
    %116 = math.tanh %115 : vector<2x32xf32>
    %117 = arith.mulf %112, %116 : vector<2x32xf32>
    %118 = vector.extract_strided_slice %20 {offsets = [10, 0], sizes = [2, 128], strides = [1, 1]} : vector<16x128xf32> to vector<2x128xf32>
    %119 = arith.truncf %117 : vector<2x32xf32> to vector<2x32xbf16>
    %cst_26 = arith.constant dense<0.000000e+00> : vector<2x128xf32>
    %120 = tpu.matmul %119, %22, %cst_26 {dimension_numbers = #tpu.dot_dimension_numbers<[1], [0], [0], [1], [0, 0, 1, 1], [], []>} : vector<2x32xbf16>, vector<32x128xbf16>, vector<2x128xf32> -> vector<2x128xf32>
    %121 = arith.addf %118, %120 : vector<2x128xf32>
    %122 = arith.negf %121 : vector<2x128xf32>
    %123 = math.exp %122 : vector<2x128xf32>
    %cst_27 = arith.constant 1.000000e+00 : f32
    %124 = vector.broadcast %cst_27 : f32 to vector<2x128xf32>
    %125 = arith.addf %124, %123 : vector<2x128xf32>
    %126 = arith.divf %124, %125 : vector<2x128xf32>
    %127 = math.tanh %121 : vector<2x128xf32>
    %128 = vector.extract_strided_slice %126 {offsets = [0, 0], sizes = [2, 32], strides = [1, 1]} : vector<2x128xf32> to vector<2x32xf32>
    %129 = vector.extract_strided_slice %126 {offsets = [0, 32], sizes = [2, 32], strides = [1, 1]} : vector<2x128xf32> to vector<2x32xf32>
    %130 = vector.extract_strided_slice %127 {offsets = [0, 64], sizes = [2, 32], strides = [1, 1]} : vector<2x128xf32> to vector<2x32xf32>
    %131 = vector.extract_strided_slice %126 {offsets = [0, 96], sizes = [2, 32], strides = [1, 1]} : vector<2x128xf32> to vector<2x32xf32>
    %132 = arith.mulf %129, %115 : vector<2x32xf32>
    %133 = arith.mulf %128, %130 : vector<2x32xf32>
    %134 = arith.addf %132, %133 : vector<2x32xf32>
    %135 = math.tanh %134 : vector<2x32xf32>
    %136 = arith.mulf %131, %135 : vector<2x32xf32>
    %137 = vector.extract_strided_slice %20 {offsets = [12, 0], sizes = [2, 128], strides = [1, 1]} : vector<16x128xf32> to vector<2x128xf32>
    %138 = arith.truncf %136 : vector<2x32xf32> to vector<2x32xbf16>
    %cst_28 = arith.constant dense<0.000000e+00> : vector<2x128xf32>
    %139 = tpu.matmul %138, %22, %cst_28 {dimension_numbers = #tpu.dot_dimension_numbers<[1], [0], [0], [1], [0, 0, 1, 1], [], []>} : vector<2x32xbf16>, vector<32x128xbf16>, vector<2x128xf32> -> vector<2x128xf32>
    %140 = arith.addf %137, %139 : vector<2x128xf32>
    %141 = arith.negf %140 : vector<2x128xf32>
    %142 = math.exp %141 : vector<2x128xf32>
    %cst_29 = arith.constant 1.000000e+00 : f32
    %143 = vector.broadcast %cst_29 : f32 to vector<2x128xf32>
    %144 = arith.addf %143, %142 : vector<2x128xf32>
    %145 = arith.divf %143, %144 : vector<2x128xf32>
    %146 = math.tanh %140 : vector<2x128xf32>
    %147 = vector.extract_strided_slice %145 {offsets = [0, 0], sizes = [2, 32], strides = [1, 1]} : vector<2x128xf32> to vector<2x32xf32>
    %148 = vector.extract_strided_slice %145 {offsets = [0, 32], sizes = [2, 32], strides = [1, 1]} : vector<2x128xf32> to vector<2x32xf32>
    %149 = vector.extract_strided_slice %146 {offsets = [0, 64], sizes = [2, 32], strides = [1, 1]} : vector<2x128xf32> to vector<2x32xf32>
    %150 = vector.extract_strided_slice %145 {offsets = [0, 96], sizes = [2, 32], strides = [1, 1]} : vector<2x128xf32> to vector<2x32xf32>
    %151 = arith.mulf %148, %134 : vector<2x32xf32>
    %152 = arith.mulf %147, %149 : vector<2x32xf32>
    %153 = arith.addf %151, %152 : vector<2x32xf32>
    %154 = math.tanh %153 : vector<2x32xf32>
    %155 = arith.mulf %150, %154 : vector<2x32xf32>
    %156 = vector.extract_strided_slice %20 {offsets = [14, 0], sizes = [2, 128], strides = [1, 1]} : vector<16x128xf32> to vector<2x128xf32>
    %157 = arith.truncf %155 : vector<2x32xf32> to vector<2x32xbf16>
    %cst_30 = arith.constant dense<0.000000e+00> : vector<2x128xf32>
    %158 = tpu.matmul %157, %22, %cst_30 {dimension_numbers = #tpu.dot_dimension_numbers<[1], [0], [0], [1], [0, 0, 1, 1], [], []>} : vector<2x32xbf16>, vector<32x128xbf16>, vector<2x128xf32> -> vector<2x128xf32>
    %159 = arith.addf %156, %158 : vector<2x128xf32>
    %160 = arith.negf %159 : vector<2x128xf32>
    %161 = math.exp %160 : vector<2x128xf32>
    %cst_31 = arith.constant 1.000000e+00 : f32
    %162 = vector.broadcast %cst_31 : f32 to vector<2x128xf32>
    %163 = arith.addf %162, %161 : vector<2x128xf32>
    %164 = arith.divf %162, %163 : vector<2x128xf32>
    %165 = math.tanh %159 : vector<2x128xf32>
    %166 = vector.extract_strided_slice %164 {offsets = [0, 0], sizes = [2, 32], strides = [1, 1]} : vector<2x128xf32> to vector<2x32xf32>
    %167 = vector.extract_strided_slice %164 {offsets = [0, 32], sizes = [2, 32], strides = [1, 1]} : vector<2x128xf32> to vector<2x32xf32>
    %168 = vector.extract_strided_slice %165 {offsets = [0, 64], sizes = [2, 32], strides = [1, 1]} : vector<2x128xf32> to vector<2x32xf32>
    %169 = vector.extract_strided_slice %164 {offsets = [0, 96], sizes = [2, 32], strides = [1, 1]} : vector<2x128xf32> to vector<2x32xf32>
    %170 = arith.mulf %167, %153 : vector<2x32xf32>
    %171 = arith.mulf %166, %168 : vector<2x32xf32>
    %172 = arith.addf %170, %171 : vector<2x32xf32>
    %173 = math.tanh %172 : vector<2x32xf32>
    %174 = arith.mulf %169, %173 : vector<2x32xf32>
    %c0_32 = arith.constant 0 : index
    %c0_33 = arith.constant 0 : index
    %c0_34 = arith.constant 0 : index
    %175 = vector.load %arg6[%c0_32, %c0_33, %c0_34] : memref<2x2x32xf32, #tpu.memory_space<vmem>>, vector<1x2x32xf32>
    %176 = vector.shape_cast %175 : vector<1x2x32xf32> to vector<2x32xf32>
    %177 = vector.shape_cast %174 : vector<2x32xf32> to vector<1x2x32xf32>
    tpu.vector_store %arg6[%c0_32, %c0_33, %c0_34], %177 {strides = array<i32>} : memref<2x2x32xf32, #tpu.memory_space<vmem>>, vector<1x2x32xf32>,
    %c0_35 = arith.constant 0 : index
    %c0_36 = arith.constant 0 : index
    %c0_37 = arith.constant 0 : index
    %178 = vector.load %arg7[%c0_35, %c0_36, %c0_37] : memref<2x2x32xf32, #tpu.memory_space<vmem>>, vector<1x2x32xf32>
    %179 = vector.shape_cast %178 : vector<1x2x32xf32> to vector<2x32xf32>
    %180 = vector.shape_cast %172 : vector<2x32xf32> to vector<1x2x32xf32>
    tpu.vector_store %arg7[%c0_35, %c0_36, %c0_37], %180 {strides = array<i32>} : memref<2x2x32xf32, #tpu.memory_space<vmem>>, vector<1x2x32xf32>,
    %c0_38 = arith.constant 0 : index
    %c0_39 = arith.constant 0 : index
    %181 = vector.load %arg2[%c0_38, %c0_39] : memref<80x128xf32, #tpu.memory_space<vmem>>, vector<32x128xf32>
    %182 = arith.truncf %181 : vector<32x128xf32> to vector<32x128xbf16>
    %c32 = arith.constant 32 : index
    %c0_40 = arith.constant 0 : index
    %183 = vector.load %arg2[%c32, %c0_40] : memref<80x128xf32, #tpu.memory_space<vmem>>, vector<32x128xf32>
    %184 = arith.truncf %183 : vector<32x128xf32> to vector<32x128xbf16>
    %c64 = arith.constant 64 : index
    %c0_41 = arith.constant 0 : index
    %185 = vector.load %arg2[%c64, %c0_41] : memref<80x128xf32, #tpu.memory_space<vmem>>, vector<1x128xf32>
    %186 = tpu.concatenate %41, %60, %79, %98, %117, %136, %155, %174 in 0 : vector<2x32xf32>, vector<2x32xf32>, vector<2x32xf32>, vector<2x32xf32>, vector<2x32xf32>, vector<2x32xf32>, vector<2x32xf32>, vector<2x32xf32> -> vector<16x32xf32>
    %187 = arith.truncf %186 : vector<16x32xf32> to vector<16x32xbf16>
    %cst_42 = arith.constant dense<0.000000e+00> : vector<16x128xf32>
    %188 = tpu.matmul %187, %182, %cst_42 {dimension_numbers = #tpu.dot_dimension_numbers<[1], [0], [0], [1], [0, 0, 1, 1], [], []>} : vector<16x32xbf16>, vector<32x128xbf16>, vector<16x128xf32> -> vector<16x128xf32>
    %189 = vector.broadcast %185 : vector<1x128xf32> to vector<16x128xf32>
    %190 = arith.addf %188, %189 : vector<16x128xf32>
    %191 = vector.extract_strided_slice %190 {offsets = [0, 0], sizes = [2, 128], strides = [1, 1]} : vector<16x128xf32> to vector<2x128xf32>
    %192 = arith.truncf %5 : vector<2x32xf32> to vector<2x32xbf16>
    %cst_43 = arith.constant dense<0.000000e+00> : vector<2x128xf32>
    %193 = tpu.matmul %192, %184, %cst_43 {dimension_numbers = #tpu.dot_dimension_numbers<[1], [0], [0], [1], [0, 0, 1, 1], [], []>} : vector<2x32xbf16>, vector<32x128xbf16>, vector<2x128xf32> -> vector<2x128xf32>
    %194 = arith.addf %191, %193 : vector<2x128xf32>
    %195 = arith.negf %194 : vector<2x128xf32>
    %196 = math.exp %195 : vector<2x128xf32>
    %cst_44 = arith.constant 1.000000e+00 : f32
    %197 = vector.broadcast %cst_44 : f32 to vector<2x128xf32>
    %198 = arith.addf %197, %196 : vector<2x128xf32>
    %199 = arith.divf %197, %198 : vector<2x128xf32>
    %200 = math.tanh %194 : vector<2x128xf32>
    %201 = vector.extract_strided_slice %199 {offsets = [0, 0], sizes = [2, 32], strides = [1, 1]} : vector<2x128xf32> to vector<2x32xf32>
    %202 = vector.extract_strided_slice %199 {offsets = [0, 32], sizes = [2, 32], strides = [1, 1]} : vector<2x128xf32> to vector<2x32xf32>
    %203 = vector.extract_strided_slice %200 {offsets = [0, 64], sizes = [2, 32], strides = [1, 1]} : vector<2x128xf32> to vector<2x32xf32>
    %204 = vector.extract_strided_slice %199 {offsets = [0, 96], sizes = [2, 32], strides = [1, 1]} : vector<2x128xf32> to vector<2x32xf32>
    %205 = arith.mulf %202, %7 : vector<2x32xf32>
    %206 = arith.mulf %201, %203 : vector<2x32xf32>
    %207 = arith.addf %205, %206 : vector<2x32xf32>
    %208 = math.tanh %207 : vector<2x32xf32>
    %209 = arith.mulf %204, %208 : vector<2x32xf32>
    %210 = vector.extract_strided_slice %190 {offsets = [2, 0], sizes = [2, 128], strides = [1, 1]} : vector<16x128xf32> to vector<2x128xf32>
    %211 = arith.truncf %209 : vector<2x32xf32> to vector<2x32xbf16>
    %cst_45 = arith.constant dense<0.000000e+00> : vector<2x128xf32>
    %212 = tpu.matmul %211, %184, %cst_45 {dimension_numbers = #tpu.dot_dimension_numbers<[1], [0], [0], [1], [0, 0, 1, 1], [], []>} : vector<2x32xbf16>, vector<32x128xbf16>, vector<2x128xf32> -> vector<2x128xf32>
    %213 = arith.addf %210, %212 : vector<2x128xf32>
    %214 = arith.negf %213 : vector<2x128xf32>
    %215 = math.exp %214 : vector<2x128xf32>
    %cst_46 = arith.constant 1.000000e+00 : f32
    %216 = vector.broadcast %cst_46 : f32 to vector<2x128xf32>
    %217 = arith.addf %216, %215 : vector<2x128xf32>
    %218 = arith.divf %216, %217 : vector<2x128xf32>
    %219 = math.tanh %213 : vector<2x128xf32>
    %220 = vector.extract_strided_slice %218 {offsets = [0, 0], sizes = [2, 32], strides = [1, 1]} : vector<2x128xf32> to vector<2x32xf32>
    %221 = vector.extract_strided_slice %218 {offsets = [0, 32], sizes = [2, 32], strides = [1, 1]} : vector<2x128xf32> to vector<2x32xf32>
    %222 = vector.extract_strided_slice %219 {offsets = [0, 64], sizes = [2, 32], strides = [1, 1]} : vector<2x128xf32> to vector<2x32xf32>
    %223 = vector.extract_strided_slice %218 {offsets = [0, 96], sizes = [2, 32], strides = [1, 1]} : vector<2x128xf32> to vector<2x32xf32>
    %224 = arith.mulf %221, %207 : vector<2x32xf32>
    %225 = arith.mulf %220, %222 : vector<2x32xf32>
    %226 = arith.addf %224, %225 : vector<2x32xf32>
    %227 = math.tanh %226 : vector<2x32xf32>
    %228 = arith.mulf %223, %227 : vector<2x32xf32>
    %229 = vector.extract_strided_slice %190 {offsets = [4, 0], sizes = [2, 128], strides = [1, 1]} : vector<16x128xf32> to vector<2x128xf32>
    %230 = arith.truncf %228 : vector<2x32xf32> to vector<2x32xbf16>
    %cst_47 = arith.constant dense<0.000000e+00> : vector<2x128xf32>
    %231 = tpu.matmul %230, %184, %cst_47 {dimension_numbers = #tpu.dot_dimension_numbers<[1], [0], [0], [1], [0, 0, 1, 1], [], []>} : vector<2x32xbf16>, vector<32x128xbf16>, vector<2x128xf32> -> vector<2x128xf32>
    %232 = arith.addf %229, %231 : vector<2x128xf32>
    %233 = arith.negf %232 : vector<2x128xf32>
    %234 = math.exp %233 : vector<2x128xf32>
    %cst_48 = arith.constant 1.000000e+00 : f32
    %235 = vector.broadcast %cst_48 : f32 to vector<2x128xf32>
    %236 = arith.addf %235, %234 : vector<2x128xf32>
    %237 = arith.divf %235, %236 : vector<2x128xf32>
    %238 = math.tanh %232 : vector<2x128xf32>
    %239 = vector.extract_strided_slice %237 {offsets = [0, 0], sizes = [2, 32], strides = [1, 1]} : vector<2x128xf32> to vector<2x32xf32>
    %240 = vector.extract_strided_slice %237 {offsets = [0, 32], sizes = [2, 32], strides = [1, 1]} : vector<2x128xf32> to vector<2x32xf32>
    %241 = vector.extract_strided_slice %238 {offsets = [0, 64], sizes = [2, 32], strides = [1, 1]} : vector<2x128xf32> to vector<2x32xf32>
    %242 = vector.extract_strided_slice %237 {offsets = [0, 96], sizes = [2, 32], strides = [1, 1]} : vector<2x128xf32> to vector<2x32xf32>
    %243 = arith.mulf %240, %226 : vector<2x32xf32>
    %244 = arith.mulf %239, %241 : vector<2x32xf32>
    %245 = arith.addf %243, %244 : vector<2x32xf32>
    %246 = math.tanh %245 : vector<2x32xf32>
    %247 = arith.mulf %242, %246 : vector<2x32xf32>
    %248 = vector.extract_strided_slice %190 {offsets = [6, 0], sizes = [2, 128], strides = [1, 1]} : vector<16x128xf32> to vector<2x128xf32>
    %249 = arith.truncf %247 : vector<2x32xf32> to vector<2x32xbf16>
    %cst_49 = arith.constant dense<0.000000e+00> : vector<2x128xf32>
    %250 = tpu.matmul %249, %184, %cst_49 {dimension_numbers = #tpu.dot_dimension_numbers<[1], [0], [0], [1], [0, 0, 1, 1], [], []>} : vector<2x32xbf16>, vector<32x128xbf16>, vector<2x128xf32> -> vector<2x128xf32>
    %251 = arith.addf %248, %250 : vector<2x128xf32>
    %252 = arith.negf %251 : vector<2x128xf32>
    %253 = math.exp %252 : vector<2x128xf32>
    %cst_50 = arith.constant 1.000000e+00 : f32
    %254 = vector.broadcast %cst_50 : f32 to vector<2x128xf32>
    %255 = arith.addf %254, %253 : vector<2x128xf32>
    %256 = arith.divf %254, %255 : vector<2x128xf32>
    %257 = math.tanh %251 : vector<2x128xf32>
    %258 = vector.extract_strided_slice %256 {offsets = [0, 0], sizes = [2, 32], strides = [1, 1]} : vector<2x128xf32> to vector<2x32xf32>
    %259 = vector.extract_strided_slice %256 {offsets = [0, 32], sizes = [2, 32], strides = [1, 1]} : vector<2x128xf32> to vector<2x32xf32>
    %260 = vector.extract_strided_slice %257 {offsets = [0, 64], sizes = [2, 32], strides = [1, 1]} : vector<2x128xf32> to vector<2x32xf32>
    %261 = vector.extract_strided_slice %256 {offsets = [0, 96], sizes = [2, 32], strides = [1, 1]} : vector<2x128xf32> to vector<2x32xf32>
    %262 = arith.mulf %259, %245 : vector<2x32xf32>
    %263 = arith.mulf %258, %260 : vector<2x32xf32>
    %264 = arith.addf %262, %263 : vector<2x32xf32>
    %265 = math.tanh %264 : vector<2x32xf32>
    %266 = arith.mulf %261, %265 : vector<2x32xf32>
    %267 = vector.extract_strided_slice %190 {offsets = [8, 0], sizes = [2, 128], strides = [1, 1]} : vector<16x128xf32> to vector<2x128xf32>
    %268 = arith.truncf %266 : vector<2x32xf32> to vector<2x32xbf16>
    %cst_51 = arith.constant dense<0.000000e+00> : vector<2x128xf32>
    %269 = tpu.matmul %268, %184, %cst_51 {dimension_numbers = #tpu.dot_dimension_numbers<[1], [0], [0], [1], [0, 0, 1, 1], [], []>} : vector<2x32xbf16>, vector<32x128xbf16>, vector<2x128xf32> -> vector<2x128xf32>
    %270 = arith.addf %267, %269 : vector<2x128xf32>
    %271 = arith.negf %270 : vector<2x128xf32>
    %272 = math.exp %271 : vector<2x128xf32>
    %cst_52 = arith.constant 1.000000e+00 : f32
    %273 = vector.broadcast %cst_52 : f32 to vector<2x128xf32>
    %274 = arith.addf %273, %272 : vector<2x128xf32>
    %275 = arith.divf %273, %274 : vector<2x128xf32>
    %276 = math.tanh %270 : vector<2x128xf32>
    %277 = vector.extract_strided_slice %275 {offsets = [0, 0], sizes = [2, 32], strides = [1, 1]} : vector<2x128xf32> to vector<2x32xf32>
    %278 = vector.extract_strided_slice %275 {offsets = [0, 32], sizes = [2, 32], strides = [1, 1]} : vector<2x128xf32> to vector<2x32xf32>
    %279 = vector.extract_strided_slice %276 {offsets = [0, 64], sizes = [2, 32], strides = [1, 1]} : vector<2x128xf32> to vector<2x32xf32>
    %280 = vector.extract_strided_slice %275 {offsets = [0, 96], sizes = [2, 32], strides = [1, 1]} : vector<2x128xf32> to vector<2x32xf32>
    %281 = arith.mulf %278, %264 : vector<2x32xf32>
    %282 = arith.mulf %277, %279 : vector<2x32xf32>
    %283 = arith.addf %281, %282 : vector<2x32xf32>
    %284 = math.tanh %283 : vector<2x32xf32>
    %285 = arith.mulf %280, %284 : vector<2x32xf32>
    %286 = vector.extract_strided_slice %190 {offsets = [10, 0], sizes = [2, 128], strides = [1, 1]} : vector<16x128xf32> to vector<2x128xf32>
    %287 = arith.truncf %285 : vector<2x32xf32> to vector<2x32xbf16>
    %cst_53 = arith.constant dense<0.000000e+00> : vector<2x128xf32>
    %288 = tpu.matmul %287, %184, %cst_53 {dimension_numbers = #tpu.dot_dimension_numbers<[1], [0], [0], [1], [0, 0, 1, 1], [], []>} : vector<2x32xbf16>, vector<32x128xbf16>, vector<2x128xf32> -> vector<2x128xf32>
    %289 = arith.addf %286, %288 : vector<2x128xf32>
    %290 = arith.negf %289 : vector<2x128xf32>
    %291 = math.exp %290 : vector<2x128xf32>
    %cst_54 = arith.constant 1.000000e+00 : f32
    %292 = vector.broadcast %cst_54 : f32 to vector<2x128xf32>
    %293 = arith.addf %292, %291 : vector<2x128xf32>
    %294 = arith.divf %292, %293 : vector<2x128xf32>
    %295 = math.tanh %289 : vector<2x128xf32>
    %296 = vector.extract_strided_slice %294 {offsets = [0, 0], sizes = [2, 32], strides = [1, 1]} : vector<2x128xf32> to vector<2x32xf32>
    %297 = vector.extract_strided_slice %294 {offsets = [0, 32], sizes = [2, 32], strides = [1, 1]} : vector<2x128xf32> to vector<2x32xf32>
    %298 = vector.extract_strided_slice %295 {offsets = [0, 64], sizes = [2, 32], strides = [1, 1]} : vector<2x128xf32> to vector<2x32xf32>
    %299 = vector.extract_strided_slice %294 {offsets = [0, 96], sizes = [2, 32], strides = [1, 1]} : vector<2x128xf32> to vector<2x32xf32>
    %300 = arith.mulf %297, %283 : vector<2x32xf32>
    %301 = arith.mulf %296, %298 : vector<2x32xf32>
    %302 = arith.addf %300, %301 : vector<2x32xf32>
    %303 = math.tanh %302 : vector<2x32xf32>
    %304 = arith.mulf %299, %303 : vector<2x32xf32>
    %305 = vector.extract_strided_slice %190 {offsets = [12, 0], sizes = [2, 128], strides = [1, 1]} : vector<16x128xf32> to vector<2x128xf32>
    %306 = arith.truncf %304 : vector<2x32xf32> to vector<2x32xbf16>
    %cst_55 = arith.constant dense<0.000000e+00> : vector<2x128xf32>
    %307 = tpu.matmul %306, %184, %cst_55 {dimension_numbers = #tpu.dot_dimension_numbers<[1], [0], [0], [1], [0, 0, 1, 1], [], []>} : vector<2x32xbf16>, vector<32x128xbf16>, vector<2x128xf32> -> vector<2x128xf32>
    %308 = arith.addf %305, %307 : vector<2x128xf32>
    %309 = arith.negf %308 : vector<2x128xf32>
    %310 = math.exp %309 : vector<2x128xf32>
    %cst_56 = arith.constant 1.000000e+00 : f32
    %311 = vector.broadcast %cst_56 : f32 to vector<2x128xf32>
    %312 = arith.addf %311, %310 : vector<2x128xf32>
    %313 = arith.divf %311, %312 : vector<2x128xf32>
    %314 = math.tanh %308 : vector<2x128xf32>
    %315 = vector.extract_strided_slice %313 {offsets = [0, 0], sizes = [2, 32], strides = [1, 1]} : vector<2x128xf32> to vector<2x32xf32>
    %316 = vector.extract_strided_slice %313 {offsets = [0, 32], sizes = [2, 32], strides = [1, 1]} : vector<2x128xf32> to vector<2x32xf32>
    %317 = vector.extract_strided_slice %314 {offsets = [0, 64], sizes = [2, 32], strides = [1, 1]} : vector<2x128xf32> to vector<2x32xf32>
    %318 = vector.extract_strided_slice %313 {offsets = [0, 96], sizes = [2, 32], strides = [1, 1]} : vector<2x128xf32> to vector<2x32xf32>
    %319 = arith.mulf %316, %302 : vector<2x32xf32>
    %320 = arith.mulf %315, %317 : vector<2x32xf32>
    %321 = arith.addf %319, %320 : vector<2x32xf32>
    %322 = math.tanh %321 : vector<2x32xf32>
    %323 = arith.mulf %318, %322 : vector<2x32xf32>
    %324 = vector.extract_strided_slice %190 {offsets = [14, 0], sizes = [2, 128], strides = [1, 1]} : vector<16x128xf32> to vector<2x128xf32>
    %325 = arith.truncf %323 : vector<2x32xf32> to vector<2x32xbf16>
    %cst_57 = arith.constant dense<0.000000e+00> : vector<2x128xf32>
    %326 = tpu.matmul %325, %184, %cst_57 {dimension_numbers = #tpu.dot_dimension_numbers<[1], [0], [0], [1], [0, 0, 1, 1], [], []>} : vector<2x32xbf16>, vector<32x128xbf16>, vector<2x128xf32> -> vector<2x128xf32>
    %327 = arith.addf %324, %326 : vector<2x128xf32>
    %328 = arith.negf %327 : vector<2x128xf32>
    %329 = math.exp %328 : vector<2x128xf32>
    %cst_58 = arith.constant 1.000000e+00 : f32
    %330 = vector.broadcast %cst_58 : f32 to vector<2x128xf32>
    %331 = arith.addf %330, %329 : vector<2x128xf32>
    %332 = arith.divf %330, %331 : vector<2x128xf32>
    %333 = math.tanh %327 : vector<2x128xf32>
    %334 = vector.extract_strided_slice %332 {offsets = [0, 0], sizes = [2, 32], strides = [1, 1]} : vector<2x128xf32> to vector<2x32xf32>
    %335 = vector.extract_strided_slice %332 {offsets = [0, 32], sizes = [2, 32], strides = [1, 1]} : vector<2x128xf32> to vector<2x32xf32>
    %336 = vector.extract_strided_slice %333 {offsets = [0, 64], sizes = [2, 32], strides = [1, 1]} : vector<2x128xf32> to vector<2x32xf32>
    %337 = vector.extract_strided_slice %332 {offsets = [0, 96], sizes = [2, 32], strides = [1, 1]} : vector<2x128xf32> to vector<2x32xf32>
    %338 = arith.mulf %335, %321 : vector<2x32xf32>
    %339 = arith.mulf %334, %336 : vector<2x32xf32>
    %340 = arith.addf %338, %339 : vector<2x32xf32>
    %341 = math.tanh %340 : vector<2x32xf32>
    %342 = arith.mulf %337, %341 : vector<2x32xf32>
    %c1_59 = arith.constant 1 : index
    %c0_60 = arith.constant 0 : index
    %c0_61 = arith.constant 0 : index
    %343 = vector.load %arg6[%c1_59, %c0_60, %c0_61] : memref<2x2x32xf32, #tpu.memory_space<vmem>>, vector<1x2x32xf32>
    %344 = vector.shape_cast %343 : vector<1x2x32xf32> to vector<2x32xf32>
    %345 = vector.shape_cast %342 : vector<2x32xf32> to vector<1x2x32xf32>
    tpu.vector_store %arg6[%c1_59, %c0_60, %c0_61], %345 {strides = array<i32>} : memref<2x2x32xf32, #tpu.memory_space<vmem>>, vector<1x2x32xf32>,
    %c1_62 = arith.constant 1 : index
    %c0_63 = arith.constant 0 : index
    %c0_64 = arith.constant 0 : index
    %346 = vector.load %arg7[%c1_62, %c0_63, %c0_64] : memref<2x2x32xf32, #tpu.memory_space<vmem>>, vector<1x2x32xf32>
    %347 = vector.shape_cast %346 : vector<1x2x32xf32> to vector<2x32xf32>
    %348 = vector.shape_cast %340 : vector<2x32xf32> to vector<1x2x32xf32>
    tpu.vector_store %arg7[%c1_62, %c0_63, %c0_64], %348 {strides = array<i32>} : memref<2x2x32xf32, #tpu.memory_space<vmem>>, vector<1x2x32xf32>,
    %c72 = arith.constant 72 : index
    %c0_65 = arith.constant 0 : index
    %349 = vector.load %arg2[%c72, %c0_65] : memref<80x128xf32, #tpu.memory_space<vmem>>, vector<1x128xf32>
    %350 = vector.extract_strided_slice %349 {offsets = [0, 0], sizes = [1, 32], strides = [1, 1]} : vector<1x128xf32> to vector<1x32xf32>
    %351 = vector.extract_strided_slice %349 {offsets = [0, 32], sizes = [1, 1], strides = [1, 1]} : vector<1x128xf32> to vector<1x1xf32>
    %352 = vector.broadcast %350 : vector<1x32xf32> to vector<2x32xf32>
    %353 = arith.mulf %342, %352 : vector<2x32xf32>
    %cst_66 = arith.constant dense<0.000000e+00> : vector<2xf32>
    %354 = vector.multi_reduction <add>, %353, %cst_66 [1] : vector<2x32xf32> to vector<2xf32>
    %355 = vector.shape_cast %354 : vector<2xf32> to vector<2x1xf32>
    %356 = vector.broadcast %351 : vector<1x1xf32> to vector<2x1xf32>
    %357 = arith.addf %355, %356 : vector<2x1xf32>
    %358 = arith.negf %357 : vector<2x1xf32>
    %359 = math.exp %358 : vector<2x1xf32>
    %cst_67 = arith.constant 1.000000e+00 : f32
    %360 = vector.broadcast %cst_67 : f32 to vector<2x1xf32>
    %361 = arith.addf %360, %359 : vector<2x1xf32>
    %362 = arith.divf %360, %361 : vector<2x1xf32>
    %c0_68 = arith.constant 0 : index
    %c0_69 = arith.constant 0 : index
    %363 = vector.load %arg5[%c0_68, %c0_69] : memref<2x1xf32, #tpu.memory_space<vmem>>, vector<2x1xf32>
    tpu.vector_store %arg5[%c0_68, %c0_69], %362 {strides = array<i32>} : memref<2x1xf32, #tpu.memory_space<vmem>>, vector<2x1xf32>,
    return
  }
}

</mosaic_0001>

<llo_original>
// kernel: sentiment_lstm_forward.1
$region0: #{sentiment_lstm_forward.1}
  #allocation0 [shape = 'u32[]', space=smem, size = 0x4, offset = 0x4, fixed_abs, tag = 'smem constant byte address 0x4 - core index']
  #allocation1 [shape = 'u32[144,128]{1,0:T(1,128)}', space=vmem, size = 0x12000, scoped, tag = 'internal scratch']
  %s0 = inlined_call_operand.vmem [shape: s32[16,1], index: 0, kind: input, shape index: {}]
  %s1 = inlined_call_operand.hbm [shape: f32[96,128], index: 1, kind: input, shape index: {}]
  %s2 = inlined_call_operand.hbm [shape: f32[80,128], index: 2, kind: input, shape index: {}]
  %s3 = inlined_call_operand.vmem [shape: f32[2,2,32], index: 3, kind: input, shape index: {}, may-alias: {3,6}]
  %s4 = inlined_call_operand.vmem [shape: f32[2,2,32], index: 4, kind: input, shape index: {}, may-alias: {4,7}]
  %s5 = inlined_call_operand.vmem [shape: f32[2,1], index: 5, kind: output, shape index: {0}]
  %s6 = inlined_call_operand.vmem [shape: f32[2,2,32], index: 6, kind: output, shape index: {1}, may-alias: {3,6}]
  %s7 = inlined_call_operand.vmem [shape: f32[2,2,32], index: 7, kind: output, shape index: {2}, may-alias: {4,7}]
  %8 = xla_tuple %s5, %s6, %s7
  %s9 = sld [smem:[#allocation0]]
  $region54: #{sentiment_lstm_forward.1} parent=0
    _
  %s11 = ssub.s32 1, %s9
  %s12 = scalar_select 0, %s11, %s9
  $region1: #{sentiment_lstm_forward.1} parent=0
    #allocation2 [shape = 'u8[49152]{0}', space=vmem, size = 0xc000, scoped, tag = 'input window, operand 1, single buffered']
    #allocation3 [shape = 's32[1]{0}', space=sflag, size = 0x4, scoped, tag = 'scoped memory for sentiment_lstm_forward.1']
    #allocation4 [shape = 'u8[40960]{0}', space=vmem, size = 0xa000, scoped, tag = 'input window, operand 2, single buffered']
    #allocation5 [shape = 's32[1]{0}', space=sflag, size = 0x4, scoped, tag = 'scoped memory for sentiment_lstm_forward.1']
    %13 = vsyncpa [#allocation3], 0
    %14 = vsyncpa [#allocation5], 0
    // Predicated region
    $region2: #{sentiment_lstm_forward.1} parent=1 // pred_check
      _
    $region3: #{sentiment_lstm_forward.1} parent=1 // pred_check_branch
      %16 = sbr.rel (0) target = $region5
    $region4: #{sentiment_lstm_forward.1} parent=1 // pred_region
      _
    $region5: #{sentiment_lstm_forward.1} parent=1 // pred_fallthru
      _
    // Predicated region
    $region6: #{sentiment_lstm_forward.1} parent=1 // pred_check
      _
    $region7: #{sentiment_lstm_forward.1} parent=1 // pred_check_branch
      %18 = sbr.rel (0) target = $region9
    $region8: #{sentiment_lstm_forward.1} parent=1 // pred_region
      %s20 = ssub.s32 1536, 1536
      %21 = vsyncadd [#allocation3], %s20
      %s22 = sshll.u32 [#allocation2], 4
      %s23 = int_to_ptr.vmem [resolvable:$true] %s22
      %28 = dma.hbm_to_vmem [thread:$0]  %s1, 1536, %s23, [#allocation3], 128, 128, 8
    $region9: #{sentiment_lstm_forward.1} parent=1 // pred_fallthru
      _
    // Predicated region
    $region10: #{sentiment_lstm_forward.1} parent=1 // pred_check
      _
    $region11: #{sentiment_lstm_forward.1} parent=1 // pred_check_branch
      %30 = sbr.rel (0) target = $region13
    $region12: #{sentiment_lstm_forward.1} parent=1 // pred_region
      %s32 = ssub.s32 1280, 1280
      %33 = vsyncadd [#allocation5], %s32
      %s34 = sshll.u32 [#allocation4], 4
      %s35 = int_to_ptr.vmem [resolvable:$true] %s34
      %40 = dma.hbm_to_vmem [thread:$0]  %s2, 1280, %s35, [#allocation5], 128, 128, 8
    $region13: #{sentiment_lstm_forward.1} parent=1 // pred_fallthru
      _
    // Predicated region
    $region14: #{sentiment_lstm_forward.1} parent=1 // pred_check
      _
    $region15: #{sentiment_lstm_forward.1} parent=1 // pred_check_branch
      %42 = sbr.rel (0) target = $region17
    $region16: #{sentiment_lstm_forward.1} parent=1 // pred_region
      _
    $region17: #{sentiment_lstm_forward.1} parent=1 // pred_fallthru
      _
    // Predicated region
    $region18: #{sentiment_lstm_forward.1} parent=1 // pred_check
      _
    $region19: #{sentiment_lstm_forward.1} parent=1 // pred_check_branch
      %44 = sbr.rel (0) target = $region21
    $region20: #{sentiment_lstm_forward.1} parent=1 // pred_region
      _
    $region21: #{sentiment_lstm_forward.1} parent=1 // pred_fallthru
      _
    // Predicated region
    $region22: #{sentiment_lstm_forward.1} parent=1 // pred_check
      _
    $region23: #{sentiment_lstm_forward.1} parent=1 // pred_check_branch
      %46 = sbr.rel (0) target = $region25
    $region24: #{sentiment_lstm_forward.1} parent=1 // pred_region
      %47 = dma.done [#allocation3], 1536
    $region25: #{sentiment_lstm_forward.1} parent=1 // pred_fallthru
      _
    // Predicated region
    $region26: #{sentiment_lstm_forward.1} parent=1 // pred_check
      _
    $region27: #{sentiment_lstm_forward.1} parent=1 // pred_check_branch
      %49 = sbr.rel (0) target = $region29
    $region28: #{sentiment_lstm_forward.1} parent=1 // pred_region
      %50 = dma.done [#allocation5], 1280
    $region29: #{sentiment_lstm_forward.1} parent=1 // pred_fallthru
      _
    %v52 = vld [vmem:[%s3] sm:$0x3]
    %v53 = vld [vmem:[%s4] sm:$0x3]
    %s54 = scalar_lea.vmem %s3, 2
    %v55 = vld [vmem:[%s54] sm:$0x3]
    %s56 = scalar_lea.vmem %s4, 2
    %v57 = vld [vmem:[%s56] sm:$0x3]
    %v58 = vlaneseq
    %v59 = vand.u32 %v58, 127
    %v60 = vld [vmem:[%s0] sm:$0xff]
    %v61 = vld [vmem:[%s0 + $0x8] sm:$0xff]
    %62 = vset.pattern.permute.xlu0 0
    %63 = vperm.xlu0 %62, %v60
    %v64 = vpop.permute.xlu0 %63
    %65 = vset.pattern.permute.xlu0 0
    %66 = vperm.xlu0 %65, %v61
    %v67 = vpop.permute.xlu0 %66
    %vm68 = vcmp.eq.s32.totalorder %v59, %v64
    %vm69 = vcmp.eq.s32.totalorder %v59, %v67
    %v70 = vsel %vm68, 1, 0
    %v71 = vsel %vm69, 1, 0
    %v72 = vcvt.s32.f32 %v70
    %v73 = vcvt.s32.f32 %v71
    %v74 = vpack.c.bf16 %v73, %v72
    %v75 = vld [vmem:[#allocation2] sm:$0xff]
    %v76 = vld [vmem:[#allocation2 + $0x8] sm:$0xff]
    %v77 = vld [vmem:[#allocation2 + $0x10] sm:$0xff]
    %v78 = vld [vmem:[#allocation2 + $0x18] sm:$0xff]
    %v79 = vld [vmem:[#allocation2 + $0x20] sm:$0xff]
    %v80 = vld [vmem:[#allocation2 + $0x28] sm:$0xff]
    %v81 = vld [vmem:[#allocation2 + $0x30] sm:$0xff]
    %v82 = vpack.c.bf16 %v76, %v75
    %v83 = vpack.c.bf16 %v78, %v77
    %v84 = vpack.c.bf16 %v80, %v79
    %v85 = vpack.c.bf16 %v81, %v81
    %v86 = vld [vmem:[#allocation2 + $0x58] sm:$0x1]
    %v87 = vlaneseq
    %v88 = vshrl.u32 %v87, 7
    %v89 = vsub.s32 0, %v88
    %v90 = vrot.slane %v86, %v89
    %vm91 = vcmask 457728
    %v93 = vsel %vm91, %v74, 0
    %vm95 = vcmask 1043456
    %v97 = vsel %vm95, %v85, 0
    %99 = vmatprep.subr.bf16.mxu0 0
    %100 = vmatpush1.bf16.msra.mxu0 %v82
    %101 = vmatprep.subr.bf16.mxu0 0
    %102 = vmatpush1.bf16.msra.mxu0 %v83
    %103 = vmatprep.subr.bf16.mxu0 0
    %104 = vmatpush1.bf16.msra.mxu0 %v84
    %105 = vmatprep.subr.bf16.mxu0 0
    %106 = vmatpush1.bf16.msra.mxu0 %v97
    %107 = vmatprep.subr.bf16.mxu0 0
    %108 = vmatpush1.bf16.msra.mxu0 0
    %109 = vmatprep.subr.bf16.mxu0 0
    %110 = vmatpush1.bf16.msra.mxu0 0
    %111 = vmatprep.subr.bf16.mxu0 0
    %112 = vmatpush1.bf16.msra.mxu0 0
    %113 = vmatprep.subr.bf16.mxu0 0
    %114 = vmatpush1.bf16.msra.mxu0 0
    %115 = vmatprep.subr.bf16.mxu0 0
    %116 = vmatpush1.bf16.msra.mxu0 0
    %117 = vmatprep.subr.bf16.mxu0 0
    %118 = vmatpush1.bf16.msra.mxu0 0
    %119 = vmatprep.subr.bf16.mxu0 0
    %120 = vmatpush1.bf16.msra.mxu0 0
    %121 = vmatprep.subr.bf16.mxu0 0
    %122 = vmatpush1.bf16.msra.mxu0 0
    %123 = vmatprep.subr.bf16.mxu0 0
    %124 = vmatpush1.bf16.msra.mxu0 0
    %125 = vmatprep.subr.bf16.mxu0 0
    %126 = vmatpush1.bf16.msra.mxu0 0
    %127 = vmatprep.subr.bf16.mxu0 0
    %128 = vmatpush1.bf16.msra.mxu0 0
    %129 = vmatprep.subr.bf16.mxu0 0
    %130 = vmatpush1.bf16.msra.mxu0 0
    %131 = vmatprep.mubr.bf16.mxu0 0
    %132 = vmatmul.mubr.bf16.gmra.mrb[0].mxu0 %v93
    %v133 = vpop.f32.mrb[0].mxu0
    %v134 = vadd.f32 %v90, %v133
    %v135 = vpop.f32.mrb[0].mxu0
    %v136 = vpop.f32.mrb[0].mxu0
    %v137 = vadd.f32 %v90, %v136
    %v138 = vpop.f32.mrb[0].mxu0
    %139 = vdwg.mxu0
    %v140 = vld [vmem:[#allocation2 + $0x38] sm:$0xff]
    %v141 = vld [vmem:[#allocation2 + $0x40] sm:$0xff]
    %v142 = vld [vmem:[#allocation2 + $0x48] sm:$0xff]
    %v143 = vld [vmem:[#allocation2 + $0x50] sm:$0xff]
    %v144 = vpack.c.bf16 %v141, %v140
    %v145 = vpack.c.bf16 %v143, %v142
    %v146 = vpack.c.bf16 %v52, %v52
    %vm147 = vcmask 261120
    %v149 = vsel %vm147, %v146, 0
    %151 = vmatprep.subr.bf16.mxu0 0
    %152 = vmatpush1.bf16.msra.mxu0 %v144
    %153 = vmatprep.subr.bf16.mxu0 0
    %154 = vmatpush1.bf16.msra.mxu0 %v145
    %155 = vmatprep.subr.bf16.mxu0 0
    %156 = vmatpush1.bf16.msra.mxu0 0
    %157 = vmatprep.subr.bf16.mxu0 0
    %158 = vmatpush1.bf16.msra.mxu0 0
    %159 = vmatprep.subr.bf16.mxu0 0
    %160 = vmatpush1.bf16.msra.mxu0 0
    %161 = vmatprep.subr.bf16.mxu0 0
    %162 = vmatpush1.bf16.msra.mxu0 0
    %163 = vmatprep.subr.bf16.mxu0 0
    %164 = vmatpush1.bf16.msra.mxu0 0
    %165 = vmatprep.subr.bf16.mxu0 0
    %166 = vmatpush1.bf16.msra.mxu0 0
    %167 = vmatprep.subr.bf16.mxu0 0
    %168 = vmatpush1.bf16.msra.mxu0 0
    %169 = vmatprep.subr.bf16.mxu0 0
    %170 = vmatpush1.bf16.msra.mxu0 0
    %171 = vmatprep.subr.bf16.mxu0 0
    %172 = vmatpush1.bf16.msra.mxu0 0
    %173 = vmatprep.subr.bf16.mxu0 0
    %174 = vmatpush1.bf16.msra.mxu0 0
    %175 = vmatprep.subr.bf16.mxu0 0
    %176 = vmatpush1.bf16.msra.mxu0 0
    %177 = vmatprep.subr.bf16.mxu0 0
    %178 = vmatpush1.bf16.msra.mxu0 0
    %179 = vmatprep.subr.bf16.mxu0 0
    %180 = vmatpush1.bf16.msra.mxu0 0
    %181 = vmatprep.subr.bf16.mxu0 0
    %182 = vmatpush1.bf16.msra.mxu0 0
    %183 = vmatprep.mubr.bf16.mxu0 0
    %184 = vmatmul.mubr.bf16.gmra.mrb[0].mxu0 %v149
    %v185 = vpop.f32.mrb[0].mxu0
    %v186 = vadd.f32 0.0, %v185
    %v187 = vpop.f32.mrb[0].mxu0
    %v188 = vpop.f32.mrb[0].mxu0
    %v189 = vpop.f32.mrb[0].mxu0
    %190 = vdwg.mxu0
    %v191 = vadd.f32 %v134, %v186
    %v192 = vxor.u32 %v191, 2147483648
    %v193 = vmul.f32 %v192, 1.442695
    %v194 = vpow.pop %v193
    %v195 = vadd.f32 %v194, 1.0
    %v196 = vrcp.pop %v195
    %v197 = vmul.f32 1.0, %v196
    %v198 = vtanh.pop %v191
    %200 = vrot.lane.b32.xlu0 %v53, 32
    %v201 = vpop.permute.xlu0 %200
    %v203 = vmul.f32 %v197, %v201
    %205 = vrot.lane.b32.xlu0 %v198, 64
    %v206 = vpop.permute.xlu0 %205
    %v208 = vmul.f32 %v197, %v206
    %210 = vrot.lane.b32.xlu0 %v208, 32
    %v211 = vpop.permute.xlu0 %210
    %v213 = vadd.f32 %v203, %v211
    %v214 = vtanh.pop %v213
    %216 = vrot.lane.b32.xlu0 %v214, 64
    %v217 = vpop.permute.xlu0 %216
    %v219 = vmul.f32 %v197, %v217
    %v220 = vpack.c.bf16 %v219, %v219
    %222 = vrot.lane.b32.xlu0 %v220, 32
    %v223 = vpop.permute.xlu0 %222
    %v225 = vsel %vm147, %v223, 0
    %227 = vmatprep.subr.bf16.mxu0 0
    %228 = vmatpush1.bf16.msra.mxu0 %v144
    %229 = vmatprep.subr.bf16.mxu0 0
    %230 = vmatpush1.bf16.msra.mxu0 %v145
    %231 = vmatprep.subr.bf16.mxu0 0
    %232 = vmatpush1.bf16.msra.mxu0 0
    %233 = vmatprep.subr.bf16.mxu0 0
    %234 = vmatpush1.bf16.msra.mxu0 0
    %235 = vmatprep.subr.bf16.mxu0 0
    %236 = vmatpush1.bf16.msra.mxu0 0
    %237 = vmatprep.subr.bf16.mxu0 0
    %238 = vmatpush1.bf16.msra.mxu0 0
    %239 = vmatprep.subr.bf16.mxu0 0
    %240 = vmatpush1.bf16.msra.mxu0 0
    %241 = vmatprep.subr.bf16.mxu0 0
    %242 = vmatpush1.bf16.msra.mxu0 0
    %243 = vmatprep.subr.bf16.mxu0 0
    %244 = vmatpush1.bf16.msra.mxu0 0
    %245 = vmatprep.subr.bf16.mxu0 0
    %246 = vmatpush1.bf16.msra.mxu0 0
    %247 = vmatprep.subr.bf16.mxu0 0
    %248 = vmatpush1.bf16.msra.mxu0 0
    %249 = vmatprep.subr.bf16.mxu0 0
    %250 = vmatpush1.bf16.msra.mxu0 0
    %251 = vmatprep.subr.bf16.mxu0 0
    %252 = vmatpush1.bf16.msra.mxu0 0
    %253 = vmatprep.subr.bf16.mxu0 0
    %254 = vmatpush1.bf16.msra.mxu0 0
    %255 = vmatprep.subr.bf16.mxu0 0
    %256 = vmatpush1.bf16.msra.mxu0 0
    %257 = vmatprep.subr.bf16.mxu0 0
    %258 = vmatpush1.bf16.msra.mxu0 0
    %259 = vmatprep.mubr.bf16.mxu0 0
    %260 = vmatmul.mubr.bf16.gmra.mrb[0].mxu0 %v225
    %v261 = vpop.f32.mrb[0].mxu0
    %v262 = vadd.f32 0.0, %v261
    %v263 = vpop.f32.mrb[0].mxu0
    %v264 = vpop.f32.mrb[0].mxu0
    %v265 = vpop.f32.mrb[0].mxu0
    %266 = vdwg.mxu0
    %v268 = vrot.slane %v262, 6
    %v270 = vadd.f32 %v134, %v268
    %v271 = vxor.u32 %v270, 2147483648
    %v272 = vmul.f32 %v271, 1.442695
    %v273 = vpow.pop %v272
    %v274 = vadd.f32 %v273, 1.0
    %v275 = vrcp.pop %v274
    %v276 = vmul.f32 1.0, %v275
    %v277 = vtanh.pop %v270
    %v279 = vrot.slane %v213, 6
    %v281 = vmul.f32 %v276, %v279
    %283 = vrot.lane.b32.xlu0 %v277, 64
    %v284 = vpop.permute.xlu0 %283
    %v286 = vmul.f32 %v276, %v284
    %288 = vrot.lane.b32.xlu0 %v286, 32
    %v289 = vpop.permute.xlu0 %288
    %v291 = vadd.f32 %v281, %v289
    %v292 = vtanh.pop %v291
    %294 = vrot.lane.b32.xlu0 %v292, 64
    %v295 = vpop.permute.xlu0 %294
    %v297 = vmul.f32 %v276, %v295
    %v298 = vpack.c.bf16 %v297, %v297
    %v300 = vrot.slane %v298, 1
    %301 = vrot.lane.b32.xlu0 %v300, 32
    %v302 = vpop.permute.xlu0 %301
    %v304 = vsel %vm147, %v302, 0
    %306 = vmatprep.subr.bf16.mxu0 0
    %307 = vmatpush1.bf16.msra.mxu0 %v144
    %308 = vmatprep.subr.bf16.mxu0 0
    %309 = vmatpush1.bf16.msra.mxu0 %v145
    %310 = vmatprep.subr.bf16.mxu0 0
    %311 = vmatpush1.bf16.msra.mxu0 0
    %312 = vmatprep.subr.bf16.mxu0 0
    %313 = vmatpush1.bf16.msra.mxu0 0
    %314 = vmatprep.subr.bf16.mxu0 0
    %315 = vmatpush1.bf16.msra.mxu0 0
    %316 = vmatprep.subr.bf16.mxu0 0
    %317 = vmatpush1.bf16.msra.mxu0 0
    %318 = vmatprep.subr.bf16.mxu0 0
    %319 = vmatpush1.bf16.msra.mxu0 0
    %320 = vmatprep.subr.bf16.mxu0 0
    %321 = vmatpush1.bf16.msra.mxu0 0
    %322 = vmatprep.subr.bf16.mxu0 0
    %323 = vmatpush1.bf16.msra.mxu0 0
    %324 = vmatprep.subr.bf16.mxu0 0
    %325 = vmatpush1.bf16.msra.mxu0 0
    %326 = vmatprep.subr.bf16.mxu0 0
    %327 = vmatpush1.bf16.msra.mxu0 0
    %328 = vmatprep.subr.bf16.mxu0 0
    %329 = vmatpush1.bf16.msra.mxu0 0
    %330 = vmatprep.subr.bf16.mxu0 0
    %331 = vmatpush1.bf16.msra.mxu0 0
    %332 = vmatprep.subr.bf16.mxu0 0
    %333 = vmatpush1.bf16.msra.mxu0 0
    %334 = vmatprep.subr.bf16.mxu0 0
    %335 = vmatpush1.bf16.msra.mxu0 0
    %336 = vmatprep.subr.bf16.mxu0 0
    %337 = vmatpush1.bf16.msra.mxu0 0
    %338 = vmatprep.mubr.bf16.mxu0 0
    %339 = vmatmul.mubr.bf16.gmra.mrb[0].mxu0 %v304
    %v340 = vpop.f32.mrb[0].mxu0
    %v341 = vadd.f32 0.0, %v340
    %v342 = vpop.f32.mrb[0].mxu0
    %v343 = vpop.f32.mrb[0].mxu0
    %v344 = vpop.f32.mrb[0].mxu0
    %345 = vdwg.mxu0
    %v347 = vrot.slane %v341, 4
    %v349 = vadd.f32 %v134, %v347
    %v350 = vxor.u32 %v349, 2147483648
    %v351 = vmul.f32 %v350, 1.442695
    %v352 = vpow.pop %v351
    %v353 = vadd.f32 %v352, 1.0
    %v354 = vrcp.pop %v353
    %v355 = vmul.f32 1.0, %v354
    %v356 = vtanh.pop %v349
    %v358 = vrot.slane %v291, 6
    %v360 = vmul.f32 %v355, %v358
    %362 = vrot.lane.b32.xlu0 %v356, 64
    %v363 = vpop.permute.xlu0 %362
    %v365 = vmul.f32 %v355, %v363
    %367 = vrot.lane.b32.xlu0 %v365, 32
    %v368 = vpop.permute.xlu0 %367
    %v370 = vadd.f32 %v360, %v368
    %v371 = vtanh.pop %v370
    %373 = vrot.lane.b32.xlu0 %v371, 64
    %v374 = vpop.permute.xlu0 %373
    %v376 = vmul.f32 %v355, %v374
    %v377 = vpack.c.bf16 %v376, %v376
    %v379 = vrot.slane %v377, 2
    %380 = vrot.lane.b32.xlu0 %v379, 32
    %v381 = vpop.permute.xlu0 %380
    %v383 = vsel %vm147, %v381, 0
    %385 = vmatprep.subr.bf16.mxu0 0
    %386 = vmatpush1.bf16.msra.mxu0 %v144
    %387 = vmatprep.subr.bf16.mxu0 0
    %388 = vmatpush1.bf16.msra.mxu0 %v145
    %389 = vmatprep.subr.bf16.mxu0 0
    %390 = vmatpush1.bf16.msra.mxu0 0
    %391 = vmatprep.subr.bf16.mxu0 0
    %392 = vmatpush1.bf16.msra.mxu0 0
    %393 = vmatprep.subr.bf16.mxu0 0
    %394 = vmatpush1.bf16.msra.mxu0 0
    %395 = vmatprep.subr.bf16.mxu0 0
    %396 = vmatpush1.bf16.msra.mxu0 0
    %397 = vmatprep.subr.bf16.mxu0 0
    %398 = vmatpush1.bf16.msra.mxu0 0
    %399 = vmatprep.subr.bf16.mxu0 0
    %400 = vmatpush1.bf16.msra.mxu0 0
    %401 = vmatprep.subr.bf16.mxu0 0
    %402 = vmatpush1.bf16.msra.mxu0 0
    %403 = vmatprep.subr.bf16.mxu0 0
    %404 = vmatpush1.bf16.msra.mxu0 0
    %405 = vmatprep.subr.bf16.mxu0 0
    %406 = vmatpush1.bf16.msra.mxu0 0
    %407 = vmatprep.subr.bf16.mxu0 0
    %408 = vmatpush1.bf16.msra.mxu0 0
    %409 = vmatprep.subr.bf16.mxu0 0
    %410 = vmatpush1.bf16.msra.mxu0 0
    %411 = vmatprep.subr.bf16.mxu0 0
    %412 = vmatpush1.bf16.msra.mxu0 0
    %413 = vmatprep.subr.bf16.mxu0 0
    %414 = vmatpush1.bf16.msra.mxu0 0
    %415 = vmatprep.subr.bf16.mxu0 0
    %416 = vmatpush1.bf16.msra.mxu0 0
    %417 = vmatprep.mubr.bf16.mxu0 0
    %418 = vmatmul.mubr.bf16.gmra.mrb[0].mxu0 %v383
    %v419 = vpop.f32.mrb[0].mxu0
    %v420 = vadd.f32 0.0, %v419
    %v421 = vpop.f32.mrb[0].mxu0
    %v422 = vpop.f32.mrb[0].mxu0
    %v423 = vpop.f32.mrb[0].mxu0
    %424 = vdwg.mxu0
    %v426 = vrot.slane %v420, 2
    %v428 = vadd.f32 %v134, %v426
    %v429 = vxor.u32 %v428, 2147483648
    %v430 = vmul.f32 %v429, 1.442695
    %v431 = vpow.pop %v430
    %v432 = vadd.f32 %v431, 1.0
    %v433 = vrcp.pop %v432
    %v434 = vmul.f32 1.0, %v433
    %v435 = vtanh.pop %v428
    %v437 = vrot.slane %v370, 6
    %v439 = vmul.f32 %v434, %v437
    %441 = vrot.lane.b32.xlu0 %v435, 64
    %v442 = vpop.permute.xlu0 %441
    %v444 = vmul.f32 %v434, %v442
    %446 = vrot.lane.b32.xlu0 %v444, 32
    %v447 = vpop.permute.xlu0 %446
    %v449 = vadd.f32 %v439, %v447
    %v450 = vtanh.pop %v449
    %452 = vrot.lane.b32.xlu0 %v450, 64
    %v453 = vpop.permute.xlu0 %452
    %v455 = vmul.f32 %v434, %v453
    %v456 = vpack.c.bf16 %v455, %v455
    %v458 = vrot.slane %v456, 3
    %459 = vrot.lane.b32.xlu0 %v458, 32
    %v460 = vpop.permute.xlu0 %459
    %v462 = vsel %vm147, %v460, 0
    %464 = vmatprep.subr.bf16.mxu0 0
    %465 = vmatpush1.bf16.msra.mxu0 %v144
    %466 = vmatprep.subr.bf16.mxu0 0
    %467 = vmatpush1.bf16.msra.mxu0 %v145
    %468 = vmatprep.subr.bf16.mxu0 0
    %469 = vmatpush1.bf16.msra.mxu0 0
    %470 = vmatprep.subr.bf16.mxu0 0
    %471 = vmatpush1.bf16.msra.mxu0 0
    %472 = vmatprep.subr.bf16.mxu0 0
    %473 = vmatpush1.bf16.msra.mxu0 0
    %474 = vmatprep.subr.bf16.mxu0 0
    %475 = vmatpush1.bf16.msra.mxu0 0
    %476 = vmatprep.subr.bf16.mxu0 0
    %477 = vmatpush1.bf16.msra.mxu0 0
    %478 = vmatprep.subr.bf16.mxu0 0
    %479 = vmatpush1.bf16.msra.mxu0 0
    %480 = vmatprep.subr.bf16.mxu0 0
    %481 = vmatpush1.bf16.msra.mxu0 0
    %482 = vmatprep.subr.bf16.mxu0 0
    %483 = vmatpush1.bf16.msra.mxu0 0
    %484 = vmatprep.subr.bf16.mxu0 0
    %485 = vmatpush1.bf16.msra.mxu0 0
    %486 = vmatprep.subr.bf16.mxu0 0
    %487 = vmatpush1.bf16.msra.mxu0 0
    %488 = vmatprep.subr.bf16.mxu0 0
    %489 = vmatpush1.bf16.msra.mxu0 0
    %490 = vmatprep.subr.bf16.mxu0 0
    %491 = vmatpush1.bf16.msra.mxu0 0
    %492 = vmatprep.subr.bf16.mxu0 0
    %493 = vmatpush1.bf16.msra.mxu0 0
    %494 = vmatprep.subr.bf16.mxu0 0
    %495 = vmatpush1.bf16.msra.mxu0 0
    %496 = vmatprep.mubr.bf16.mxu0 0
    %497 = vmatmul.mubr.bf16.gmra.mrb[0].mxu0 %v462
    %v498 = vpop.f32.mrb[0].mxu0
    %v499 = vadd.f32 0.0, %v498
    %v500 = vpop.f32.mrb[0].mxu0
    %v501 = vpop.f32.mrb[0].mxu0
    %v502 = vpop.f32.mrb[0].mxu0
    %503 = vdwg.mxu0
    %v504 = vadd.f32 %v137, %v499
    %v505 = vxor.u32 %v504, 2147483648
    %v506 = vmul.f32 %v505, 1.442695
    %v507 = vpow.pop %v506
    %v508 = vadd.f32 %v507, 1.0
    %v509 = vrcp.pop %v508
    %v510 = vmul.f32 1.0, %v509
    %v511 = vtanh.pop %v504
    %v513 = vrot.slane %v449, 6
    %v515 = vmul.f32 %v510, %v513
    %517 = vrot.lane.b32.xlu0 %v511, 64
    %v518 = vpop.permute.xlu0 %517
    %v520 = vmul.f32 %v510, %v518
    %522 = vrot.lane.b32.xlu0 %v520, 32
    %v523 = vpop.permute.xlu0 %522
    %v525 = vadd.f32 %v515, %v523
    %v526 = vtanh.pop %v525
    %528 = vrot.lane.b32.xlu0 %v526, 64
    %v529 = vpop.permute.xlu0 %528
    %v531 = vmul.f32 %v510, %v529
    %v532 = vpack.c.bf16 %v531, %v531
    %534 = vrot.lane.b32.xlu0 %v532, 32
    %v535 = vpop.permute.xlu0 %534
    %v537 = vsel %vm147, %v535, 0
    %539 = vmatprep.subr.bf16.mxu0 0
    %540 = vmatpush1.bf16.msra.mxu0 %v144
    %541 = vmatprep.subr.bf16.mxu0 0
    %542 = vmatpush1.bf16.msra.mxu0 %v145
    %543 = vmatprep.subr.bf16.mxu0 0
    %544 = vmatpush1.bf16.msra.mxu0 0
    %545 = vmatprep.subr.bf16.mxu0 0
    %546 = vmatpush1.bf16.msra.mxu0 0
    %547 = vmatprep.subr.bf16.mxu0 0
    %548 = vmatpush1.bf16.msra.mxu0 0
    %549 = vmatprep.subr.bf16.mxu0 0
    %550 = vmatpush1.bf16.msra.mxu0 0
    %551 = vmatprep.subr.bf16.mxu0 0
    %552 = vmatpush1.bf16.msra.mxu0 0
    %553 = vmatprep.subr.bf16.mxu0 0
    %554 = vmatpush1.bf16.msra.mxu0 0
    %555 = vmatprep.subr.bf16.mxu0 0
    %556 = vmatpush1.bf16.msra.mxu0 0
    %557 = vmatprep.subr.bf16.mxu0 0
    %558 = vmatpush1.bf16.msra.mxu0 0
    %559 = vmatprep.subr.bf16.mxu0 0
    %560 = vmatpush1.bf16.msra.mxu0 0
    %561 = vmatprep.subr.bf16.mxu0 0
    %562 = vmatpush1.bf16.msra.mxu0 0
    %563 = vmatprep.subr.bf16.mxu0 0
    %564 = vmatpush1.bf16.msra.mxu0 0
    %565 = vmatprep.subr.bf16.mxu0 0
    %566 = vmatpush1.bf16.msra.mxu0 0
    %567 = vmatprep.subr.bf16.mxu0 0
    %568 = vmatpush1.bf16.msra.mxu0 0
    %569 = vmatprep.subr.bf16.mxu0 0
    %570 = vmatpush1.bf16.msra.mxu0 0
    %571 = vmatprep.mubr.bf16.mxu0 0
    %572 = vmatmul.mubr.bf16.gmra.mrb[0].mxu0 %v537
    %v573 = vpop.f32.mrb[0].mxu0
    %v574 = vadd.f32 0.0, %v573
    %v575 = vpop.f32.mrb[0].mxu0
    %v576 = vpop.f32.mrb[0].mxu0
    %v577 = vpop.f32.mrb[0].mxu0
    %578 = vdwg.mxu0
    %v580 = vrot.slane %v574, 6
    %v582 = vadd.f32 %v137, %v580
    %v583 = vxor.u32 %v582, 2147483648
    %v584 = vmul.f32 %v583, 1.442695
    %v585 = vpow.pop %v584
    %v586 = vadd.f32 %v585, 1.0
    %v587 = vrcp.pop %v586
    %v588 = vmul.f32 1.0, %v587
    %v589 = vtanh.pop %v582
    %v591 = vrot.slane %v525, 6
    %v593 = vmul.f32 %v588, %v591
    %595 = vrot.lane.b32.xlu0 %v589, 64
    %v596 = vpop.permute.xlu0 %595
    %v598 = vmul.f32 %v588, %v596
    %600 = vrot.lane.b32.xlu0 %v598, 32
    %v601 = vpop.permute.xlu0 %600
    %v603 = vadd.f32 %v593, %v601
    %v604 = vtanh.pop %v603
    %606 = vrot.lane.b32.xlu0 %v604, 64
    %v607 = vpop.permute.xlu0 %606
    %v609 = vmul.f32 %v588, %v607
    %v610 = vpack.c.bf16 %v609, %v609
    %v612 = vrot.slane %v610, 1
    %613 = vrot.lane.b32.xlu0 %v612, 32
    %v614 = vpop.permute.xlu0 %613
    %v616 = vsel %vm147, %v614, 0
    %618 = vmatprep.subr.bf16.mxu0 0
    %619 = vmatpush1.bf16.msra.mxu0 %v144
    %620 = vmatprep.subr.bf16.mxu0 0
    %621 = vmatpush1.bf16.msra.mxu0 %v145
    %622 = vmatprep.subr.bf16.mxu0 0
    %623 = vmatpush1.bf16.msra.mxu0 0
    %624 = vmatprep.subr.bf16.mxu0 0
    %625 = vmatpush1.bf16.msra.mxu0 0
    %626 = vmatprep.subr.bf16.mxu0 0
    %627 = vmatpush1.bf16.msra.mxu0 0
    %628 = vmatprep.subr.bf16.mxu0 0
    %629 = vmatpush1.bf16.msra.mxu0 0
    %630 = vmatprep.subr.bf16.mxu0 0
    %631 = vmatpush1.bf16.msra.mxu0 0
    %632 = vmatprep.subr.bf16.mxu0 0
    %633 = vmatpush1.bf16.msra.mxu0 0
    %634 = vmatprep.subr.bf16.mxu0 0
    %635 = vmatpush1.bf16.msra.mxu0 0
    %636 = vmatprep.subr.bf16.mxu0 0
    %637 = vmatpush1.bf16.msra.mxu0 0
    %638 = vmatprep.subr.bf16.mxu0 0
    %639 = vmatpush1.bf16.msra.mxu0 0
    %640 = vmatprep.subr.bf16.mxu0 0
    %641 = vmatpush1.bf16.msra.mxu0 0
    %642 = vmatprep.subr.bf16.mxu0 0
    %643 = vmatpush1.bf16.msra.mxu0 0
    %644 = vmatprep.subr.bf16.mxu0 0
    %645 = vmatpush1.bf16.msra.mxu0 0
    %646 = vmatprep.subr.bf16.mxu0 0
    %647 = vmatpush1.bf16.msra.mxu0 0
    %648 = vmatprep.subr.bf16.mxu0 0
    %649 = vmatpush1.bf16.msra.mxu0 0
    %650 = vmatprep.mubr.bf16.mxu0 0
    %651 = vmatmul.mubr.bf16.gmra.mrb[0].mxu0 %v616
    %v652 = vpop.f32.mrb[0].mxu0
    %v653 = vadd.f32 0.0, %v652
    %v654 = vpop.f32.mrb[0].mxu0
    %v655 = vpop.f32.mrb[0].mxu0
    %v656 = vpop.f32.mrb[0].mxu0
    %657 = vdwg.mxu0
    %v659 = vrot.slane %v653, 4
    %v661 = vadd.f32 %v137, %v659
    %v662 = vxor.u32 %v661, 2147483648
    %v663 = vmul.f32 %v662, 1.442695
    %v664 = vpow.pop %v663
    %v665 = vadd.f32 %v664, 1.0
    %v666 = vrcp.pop %v665
    %v667 = vmul.f32 1.0, %v666
    %v668 = vtanh.pop %v661
    %v670 = vrot.slane %v603, 6
    %v672 = vmul.f32 %v667, %v670
    %674 = vrot.lane.b32.xlu0 %v668, 64
    %v675 = vpop.permute.xlu0 %674
    %v677 = vmul.f32 %v667, %v675
    %679 = vrot.lane.b32.xlu0 %v677, 32
    %v680 = vpop.permute.xlu0 %679
    %v682 = vadd.f32 %v672, %v680
    %v683 = vtanh.pop %v682
    %685 = vrot.lane.b32.xlu0 %v683, 64
    %v686 = vpop.permute.xlu0 %685
    %v688 = vmul.f32 %v667, %v686
    %v689 = vpack.c.bf16 %v688, %v688
    %v691 = vrot.slane %v689, 2
    %692 = vrot.lane.b32.xlu0 %v691, 32
    %v693 = vpop.permute.xlu0 %692
    %v695 = vsel %vm147, %v693, 0
    %697 = vmatprep.subr.bf16.mxu0 0
    %698 = vmatpush1.bf16.msra.mxu0 %v144
    %699 = vmatprep.subr.bf16.mxu0 0
    %700 = vmatpush1.bf16.msra.mxu0 %v145
    %701 = vmatprep.subr.bf16.mxu0 0
    %702 = vmatpush1.bf16.msra.mxu0 0
    %703 = vmatprep.subr.bf16.mxu0 0
    %704 = vmatpush1.bf16.msra.mxu0 0
    %705 = vmatprep.subr.bf16.mxu0 0
    %706 = vmatpush1.bf16.msra.mxu0 0
    %707 = vmatprep.subr.bf16.mxu0 0
    %708 = vmatpush1.bf16.msra.mxu0 0
    %709 = vmatprep.subr.bf16.mxu0 0
    %710 = vmatpush1.bf16.msra.mxu0 0
    %711 = vmatprep.subr.bf16.mxu0 0
    %712 = vmatpush1.bf16.msra.mxu0 0
    %713 = vmatprep.subr.bf16.mxu0 0
    %714 = vmatpush1.bf16.msra.mxu0 0
    %715 = vmatprep.subr.bf16.mxu0 0
    %716 = vmatpush1.bf16.msra.mxu0 0
    %717 = vmatprep.subr.bf16.mxu0 0
    %718 = vmatpush1.bf16.msra.mxu0 0
    %719 = vmatprep.subr.bf16.mxu0 0
    %720 = vmatpush1.bf16.msra.mxu0 0
    %721 = vmatprep.subr.bf16.mxu0 0
    %722 = vmatpush1.bf16.msra.mxu0 0
    %723 = vmatprep.subr.bf16.mxu0 0
    %724 = vmatpush1.bf16.msra.mxu0 0
    %725 = vmatprep.subr.bf16.mxu0 0
    %726 = vmatpush1.bf16.msra.mxu0 0
    %727 = vmatprep.subr.bf16.mxu0 0
    %728 = vmatpush1.bf16.msra.mxu0 0
    %729 = vmatprep.mubr.bf16.mxu0 0
    %730 = vmatmul.mubr.bf16.gmra.mrb[0].mxu0 %v695
    %v731 = vpop.f32.mrb[0].mxu0
    %v732 = vadd.f32 0.0, %v731
    %v733 = vpop.f32.mrb[0].mxu0
    %v734 = vpop.f32.mrb[0].mxu0
    %v735 = vpop.f32.mrb[0].mxu0
    %736 = vdwg.mxu0
    %v738 = vrot.slane %v732, 2
    %v740 = vadd.f32 %v137, %v738
    %v741 = vxor.u32 %v740, 2147483648
    %v742 = vmul.f32 %v741, 1.442695
    %v743 = vpow.pop %v742
    %v744 = vadd.f32 %v743, 1.0
    %v745 = vrcp.pop %v744
    %v746 = vmul.f32 1.0, %v745
    %v747 = vtanh.pop %v740
    %v749 = vrot.slane %v682, 6
    %v751 = vmul.f32 %v746, %v749
    %753 = vrot.lane.b32.xlu0 %v747, 64
    %v754 = vpop.permute.xlu0 %753
    %v756 = vmul.f32 %v746, %v754
    %758 = vrot.lane.b32.xlu0 %v756, 32
    %v759 = vpop.permute.xlu0 %758
    %v761 = vadd.f32 %v751, %v759
    %v762 = vtanh.pop %v761
    %764 = vrot.lane.b32.xlu0 %v762, 64
    %v765 = vpop.permute.xlu0 %764
    %v767 = vmul.f32 %v746, %v765
    %769 = vrot.lane.b32.xlu0 %v767, 32
    %v770 = vpop.permute.xlu0 %769
    %vm772 = vcmask 261126
    %773 = vst.msk [vmem:[%s6 - $0x6] sm:$0xc0] %vm772, %v770
    %775 = vrot.lane.b32.xlu0 %v761, 96
    %v776 = vpop.permute.xlu0 %775
    %778 = vst.msk [vmem:[%s7 - $0x6] sm:$0xc0] %vm772, %v776
    %v779 = vld [vmem:[#allocation4] sm:$0xff]
    %v780 = vld [vmem:[#allocation4 + $0x8] sm:$0xff]
    %v781 = vld [vmem:[#allocation4 + $0x10] sm:$0xff]
    %v782 = vld [vmem:[#allocation4 + $0x18] sm:$0xff]
    %v783 = vpack.c.bf16 %v780, %v779
    %v784 = vpack.c.bf16 %v782, %v781
    %v785 = vld [vmem:[#allocation4 + $0x20] sm:$0xff]
    %v786 = vld [vmem:[#allocation4 + $0x28] sm:$0xff]
    %v787 = vld [vmem:[#allocation4 + $0x30] sm:$0xff]
    %v788 = vld [vmem:[#allocation4 + $0x38] sm:$0xff]
    %v789 = vpack.c.bf16 %v786, %v785
    %v790 = vpack.c.bf16 %v788, %v787
    %v791 = vld [vmem:[#allocation4 + $0x40] sm:$0x1]
    %vm792 = vcmask 1041408
    %v793 = vsel %vm792, %v219, %v297
    %v794 = vsel %vm95, %v793, %v376
    %vm795 = vcmask 1045504
    %v796 = vsel %vm795, %v794, %v455
    %v797 = vsel %vm792, %v531, %v609
    %v798 = vsel %vm95, %v797, %v688
    %v799 = vsel %vm795, %v798, %v767
    %v800 = vpack.c.bf16 %v799, %v796
    %v801 = vlaneseq
    %v802 = vshrl.u32 %v801, 7
    %v803 = vsub.s32 0, %v802
    %v804 = vrot.slane %v791, %v803
    %806 = vrot.lane.b32.xlu0 %v800, 32
    %v807 = vpop.permute.xlu0 %806
    %v809 = vsel %vm147, %v807, 0
    %811 = vmatprep.subr.bf16.mxu0 0
    %812 = vmatpush1.bf16.msra.mxu0 %v783
    %813 = vmatprep.subr.bf16.mxu0 0
    %814 = vmatpush1.bf16.msra.mxu0 %v784
    %815 = vmatprep.subr.bf16.mxu0 0
    %816 = vmatpush1.bf16.msra.mxu0 0
    %817 = vmatprep.subr.bf16.mxu0 0
    %818 = vmatpush1.bf16.msra.mxu0 0
    %819 = vmatprep.subr.bf16.mxu0 0
    %820 = vmatpush1.bf16.msra.mxu0 0
    %821 = vmatprep.subr.bf16.mxu0 0
    %822 = vmatpush1.bf16.msra.mxu0 0
    %823 = vmatprep.subr.bf16.mxu0 0
    %824 = vmatpush1.bf16.msra.mxu0 0
    %825 = vmatprep.subr.bf16.mxu0 0
    %826 = vmatpush1.bf16.msra.mxu0 0
    %827 = vmatprep.subr.bf16.mxu0 0
    %828 = vmatpush1.bf16.msra.mxu0 0
    %829 = vmatprep.subr.bf16.mxu0 0
    %830 = vmatpush1.bf16.msra.mxu0 0
    %831 = vmatprep.subr.bf16.mxu0 0
    %832 = vmatpush1.bf16.msra.mxu0 0
    %833 = vmatprep.subr.bf16.mxu0 0
    %834 = vmatpush1.bf16.msra.mxu0 0
    %835 = vmatprep.subr.bf16.mxu0 0
    %836 = vmatpush1.bf16.msra.mxu0 0
    %837 = vmatprep.subr.bf16.mxu0 0
    %838 = vmatpush1.bf16.msra.mxu0 0
    %839 = vmatprep.subr.bf16.mxu0 0
    %840 = vmatpush1.bf16.msra.mxu0 0
    %841 = vmatprep.subr.bf16.mxu0 0
    %842 = vmatpush1.bf16.msra.mxu0 0
    %843 = vmatprep.mubr.bf16.mxu0 0
    %844 = vmatmul.mubr.bf16.gmra.mrb[0].mxu0 %v809
    %v845 = vpop.f32.mrb[0].mxu0
    %v846 = vadd.f32 %v804, %v845
    %v847 = vpop.f32.mrb[0].mxu0
    %v848 = vpop.f32.mrb[0].mxu0
    %v849 = vadd.f32 %v804, %v848
    %v850 = vpop.f32.mrb[0].mxu0
    %851 = vdwg.mxu0
    %v852 = vpack.c.bf16 %v55, %v55
    %v854 = vsel %vm147, %v852, 0
    %856 = vmatprep.subr.bf16.mxu0 0
    %857 = vmatpush1.bf16.msra.mxu0 %v789
    %858 = vmatprep.subr.bf16.mxu0 0
    %859 = vmatpush1.bf16.msra.mxu0 %v790
    %860 = vmatprep.subr.bf16.mxu0 0
    %861 = vmatpush1.bf16.msra.mxu0 0
    %862 = vmatprep.subr.bf16.mxu0 0
    %863 = vmatpush1.bf16.msra.mxu0 0
    %864 = vmatprep.subr.bf16.mxu0 0
    %865 = vmatpush1.bf16.msra.mxu0 0
    %866 = vmatprep.subr.bf16.mxu0 0
    %867 = vmatpush1.bf16.msra.mxu0 0
    %868 = vmatprep.subr.bf16.mxu0 0
    %869 = vmatpush1.bf16.msra.mxu0 0
    %870 = vmatprep.subr.bf16.mxu0 0
    %871 = vmatpush1.bf16.msra.mxu0 0
    %872 = vmatprep.subr.bf16.mxu0 0
    %873 = vmatpush1.bf16.msra.mxu0 0
    %874 = vmatprep.subr.bf16.mxu0 0
    %875 = vmatpush1.bf16.msra.mxu0 0
    %876 = vmatprep.subr.bf16.mxu0 0
    %877 = vmatpush1.bf16.msra.mxu0 0
    %878 = vmatprep.subr.bf16.mxu0 0
    %879 = vmatpush1.bf16.msra.mxu0 0
    %880 = vmatprep.subr.bf16.mxu0 0
    %881 = vmatpush1.bf16.msra.mxu0 0
    %882 = vmatprep.subr.bf16.mxu0 0
    %883 = vmatpush1.bf16.msra.mxu0 0
    %884 = vmatprep.subr.bf16.mxu0 0
    %885 = vmatpush1.bf16.msra.mxu0 0
    %886 = vmatprep.subr.bf16.mxu0 0
    %887 = vmatpush1.bf16.msra.mxu0 0
    %888 = vmatprep.mubr.bf16.mxu0 0
    %889 = vmatmul.mubr.bf16.gmra.mrb[0].mxu0 %v854
    %v890 = vpop.f32.mrb[0].mxu0
    %v891 = vadd.f32 0.0, %v890
    %v892 = vpop.f32.mrb[0].mxu0
    %v893 = vpop.f32.mrb[0].mxu0
    %v894 = vpop.f32.mrb[0].mxu0
    %895 = vdwg.mxu0
    %v896 = vadd.f32 %v846, %v891
    %v897 = vxor.u32 %v896, 2147483648
    %v898 = vmul.f32 %v897, 1.442695
    %v899 = vpow.pop %v898
    %v900 = vadd.f32 %v899, 1.0
    %v901 = vrcp.pop %v900
    %v902 = vmul.f32 1.0, %v901
    %v903 = vtanh.pop %v896
    %905 = vrot.lane.b32.xlu0 %v57, 32
    %v906 = vpop.permute.xlu0 %905
    %v908 = vmul.f32 %v902, %v906
    %910 = vrot.lane.b32.xlu0 %v903, 64
    %v911 = vpop.permute.xlu0 %910
    %v913 = vmul.f32 %v902, %v911
    %915 = vrot.lane.b32.xlu0 %v913, 32
    %v916 = vpop.permute.xlu0 %915
    %v918 = vadd.f32 %v908, %v916
    %v919 = vtanh.pop %v918
    %921 = vrot.lane.b32.xlu0 %v919, 64
    %v922 = vpop.permute.xlu0 %921
    %v924 = vmul.f32 %v902, %v922
    %v925 = vpack.c.bf16 %v924, %v924
    %927 = vrot.lane.b32.xlu0 %v925, 32
    %v928 = vpop.permute.xlu0 %927
    %v930 = vsel %vm147, %v928, 0
    %932 = vmatprep.subr.bf16.mxu0 0
    %933 = vmatpush1.bf16.msra.mxu0 %v789
    %934 = vmatprep.subr.bf16.mxu0 0
    %935 = vmatpush1.bf16.msra.mxu0 %v790
    %936 = vmatprep.subr.bf16.mxu0 0
    %937 = vmatpush1.bf16.msra.mxu0 0
    %938 = vmatprep.subr.bf16.mxu0 0
    %939 = vmatpush1.bf16.msra.mxu0 0
    %940 = vmatprep.subr.bf16.mxu0 0
    %941 = vmatpush1.bf16.msra.mxu0 0
    %942 = vmatprep.subr.bf16.mxu0 0
    %943 = vmatpush1.bf16.msra.mxu0 0
    %944 = vmatprep.subr.bf16.mxu0 0
    %945 = vmatpush1.bf16.msra.mxu0 0
    %946 = vmatprep.subr.bf16.mxu0 0
    %947 = vmatpush1.bf16.msra.mxu0 0
    %948 = vmatprep.subr.bf16.mxu0 0
    %949 = vmatpush1.bf16.msra.mxu0 0
    %950 = vmatprep.subr.bf16.mxu0 0
    %951 = vmatpush1.bf16.msra.mxu0 0
    %952 = vmatprep.subr.bf16.mxu0 0
    %953 = vmatpush1.bf16.msra.mxu0 0
    %954 = vmatprep.subr.bf16.mxu0 0
    %955 = vmatpush1.bf16.msra.mxu0 0
    %956 = vmatprep.subr.bf16.mxu0 0
    %957 = vmatpush1.bf16.msra.mxu0 0
    %958 = vmatprep.subr.bf16.mxu0 0
    %959 = vmatpush1.bf16.msra.mxu0 0
    %960 = vmatprep.subr.bf16.mxu0 0
    %961 = vmatpush1.bf16.msra.mxu0 0
    %962 = vmatprep.subr.bf16.mxu0 0
    %963 = vmatpush1.bf16.msra.mxu0 0
    %964 = vmatprep.mubr.bf16.mxu0 0
    %965 = vmatmul.mubr.bf16.gmra.mrb[0].mxu0 %v930
    %v966 = vpop.f32.mrb[0].mxu0
    %v967 = vadd.f32 0.0, %v966
    %v968 = vpop.f32.mrb[0].mxu0
    %v969 = vpop.f32.mrb[0].mxu0
    %v970 = vpop.f32.mrb[0].mxu0
    %971 = vdwg.mxu0
    %v973 = vrot.slane %v967, 6
    %v975 = vadd.f32 %v846, %v973
    %v976 = vxor.u32 %v975, 2147483648
    %v977 = vmul.f32 %v976, 1.442695
    %v978 = vpow.pop %v977
    %v979 = vadd.f32 %v978, 1.0
    %v980 = vrcp.pop %v979
    %v981 = vmul.f32 1.0, %v980
    %v982 = vtanh.pop %v975
    %v984 = vrot.slane %v918, 6
    %v986 = vmul.f32 %v981, %v984
    %988 = vrot.lane.b32.xlu0 %v982, 64
    %v989 = vpop.permute.xlu0 %988
    %v991 = vmul.f32 %v981, %v989
    %993 = vrot.lane.b32.xlu0 %v991, 32
    %v994 = vpop.permute.xlu0 %993
    %v996 = vadd.f32 %v986, %v994
    %v997 = vtanh.pop %v996
    %999 = vrot.lane.b32.xlu0 %v997, 64
    %v1000 = vpop.permute.xlu0 %999
    %v1002 = vmul.f32 %v981, %v1000
    %v1003 = vpack.c.bf16 %v1002, %v1002
    %v1005 = vrot.slane %v1003, 1
    %1006 = vrot.lane.b32.xlu0 %v1005, 32
    %v1007 = vpop.permute.xlu0 %1006
    %v1009 = vsel %vm147, %v1007, 0
    %1011 = vmatprep.subr.bf16.mxu0 0
    %1012 = vmatpush1.bf16.msra.mxu0 %v789
    %1013 = vmatprep.subr.bf16.mxu0 0
    %1014 = vmatpush1.bf16.msra.mxu0 %v790
    %1015 = vmatprep.subr.bf16.mxu0 0
    %1016 = vmatpush1.bf16.msra.mxu0 0
    %1017 = vmatprep.subr.bf16.mxu0 0
    %1018 = vmatpush1.bf16.msra.mxu0 0
    %1019 = vmatprep.subr.bf16.mxu0 0
    %1020 = vmatpush1.bf16.msra.mxu0 0
    %1021 = vmatprep.subr.bf16.mxu0 0
    %1022 = vmatpush1.bf16.msra.mxu0 0
    %1023 = vmatprep.subr.bf16.mxu0 0
    %1024 = vmatpush1.bf16.msra.mxu0 0
    %1025 = vmatprep.subr.bf16.mxu0 0
    %1026 = vmatpush1.bf16.msra.mxu0 0
    %1027 = vmatprep.subr.bf16.mxu0 0
    %1028 = vmatpush1.bf16.msra.mxu0 0
    %1029 = vmatprep.subr.bf16.mxu0 0
    %1030 = vmatpush1.bf16.msra.mxu0 0
    %1031 = vmatprep.subr.bf16.mxu0 0
    %1032 = vmatpush1.bf16.msra.mxu0 0
    %1033 = vmatprep.subr.bf16.mxu0 0
    %1034 = vmatpush1.bf16.msra.mxu0 0
    %1035 = vmatprep.subr.bf16.mxu0 0
    %1036 = vmatpush1.bf16.msra.mxu0 0
    %1037 = vmatprep.subr.bf16.mxu0 0
    %1038 = vmatpush1.bf16.msra.mxu0 0
    %1039 = vmatprep.subr.bf16.mxu0 0
    %1040 = vmatpush1.bf16.msra.mxu0 0
    %1041 = vmatprep.subr.bf16.mxu0 0
    %1042 = vmatpush1.bf16.msra.mxu0 0
    %1043 = vmatprep.mubr.bf16.mxu0 0
    %1044 = vmatmul.mubr.bf16.gmra.mrb[0].mxu0 %v1009
    %v1045 = vpop.f32.mrb[0].mxu0
    %v1046 = vadd.f32 0.0, %v1045
    %v1047 = vpop.f32.mrb[0].mxu0
    %v1048 = vpop.f32.mrb[0].mxu0
    %v1049 = vpop.f32.mrb[0].mxu0
    %1050 = vdwg.mxu0
    %v1052 = vrot.slane %v1046, 4
    %v1054 = vadd.f32 %v846, %v1052
    %v1055 = vxor.u32 %v1054, 2147483648
    %v1056 = vmul.f32 %v1055, 1.442695
    %v1057 = vpow.pop %v1056
    %v1058 = vadd.f32 %v1057, 1.0
    %v1059 = vrcp.pop %v1058
    %v1060 = vmul.f32 1.0, %v1059
    %v1061 = vtanh.pop %v1054
    %v1063 = vrot.slane %v996, 6
    %v1065 = vmul.f32 %v1060, %v1063
    %1067 = vrot.lane.b32.xlu0 %v1061, 64
    %v1068 = vpop.permute.xlu0 %1067
    %v1070 = vmul.f32 %v1060, %v1068
    %1072 = vrot.lane.b32.xlu0 %v1070, 32
    %v1073 = vpop.permute.xlu0 %1072
    %v1075 = vadd.f32 %v1065, %v1073
    %v1076 = vtanh.pop %v1075
    %1078 = vrot.lane.b32.xlu0 %v1076, 64
    %v1079 = vpop.permute.xlu0 %1078
    %v1081 = vmul.f32 %v1060, %v1079
    %v1082 = vpack.c.bf16 %v1081, %v1081
    %v1084 = vrot.slane %v1082, 2
    %1085 = vrot.lane.b32.xlu0 %v1084, 32
    %v1086 = vpop.permute.xlu0 %1085
    %v1088 = vsel %vm147, %v1086, 0
    %1090 = vmatprep.subr.bf16.mxu0 0
    %1091 = vmatpush1.bf16.msra.mxu0 %v789
    %1092 = vmatprep.subr.bf16.mxu0 0
    %1093 = vmatpush1.bf16.msra.mxu0 %v790
    %1094 = vmatprep.subr.bf16.mxu0 0
    %1095 = vmatpush1.bf16.msra.mxu0 0
    %1096 = vmatprep.subr.bf16.mxu0 0
    %1097 = vmatpush1.bf16.msra.mxu0 0
    %1098 = vmatprep.subr.bf16.mxu0 0
    %1099 = vmatpush1.bf16.msra.mxu0 0
    %1100 = vmatprep.subr.bf16.mxu0 0
    %1101 = vmatpush1.bf16.msra.mxu0 0
    %1102 = vmatprep.subr.bf16.mxu0 0
    %1103 = vmatpush1.bf16.msra.mxu0 0
    %1104 = vmatprep.subr.bf16.mxu0 0
    %1105 = vmatpush1.bf16.msra.mxu0 0
    %1106 = vmatprep.subr.bf16.mxu0 0
    %1107 = vmatpush1.bf16.msra.mxu0 0
    %1108 = vmatprep.subr.bf16.mxu0 0
    %1109 = vmatpush1.bf16.msra.mxu0 0
    %1110 = vmatprep.subr.bf16.mxu0 0
    %1111 = vmatpush1.bf16.msra.mxu0 0
    %1112 = vmatprep.subr.bf16.mxu0 0
    %1113 = vmatpush1.bf16.msra.mxu0 0
    %1114 = vmatprep.subr.bf16.mxu0 0
    %1115 = vmatpush1.bf16.msra.mxu0 0
    %1116 = vmatprep.subr.bf16.mxu0 0
    %1117 = vmatpush1.bf16.msra.mxu0 0
    %1118 = vmatprep.subr.bf16.mxu0 0
    %1119 = vmatpush1.bf16.msra.mxu0 0
    %1120 = vmatprep.subr.bf16.mxu0 0
    %1121 = vmatpush1.bf16.msra.mxu0 0
    %1122 = vmatprep.mubr.bf16.mxu0 0
    %1123 = vmatmul.mubr.bf16.gmra.mrb[0].mxu0 %v1088
    %v1124 = vpop.f32.mrb[0].mxu0
    %v1125 = vadd.f32 0.0, %v1124
    %v1126 = vpop.f32.mrb[0].mxu0
    %v1127 = vpop.f32.mrb[0].mxu0
    %v1128 = vpop.f32.mrb[0].mxu0
    %1129 = vdwg.mxu0
    %v1131 = vrot.slane %v1125, 2
    %v1133 = vadd.f32 %v846, %v1131
    %v1134 = vxor.u32 %v1133, 2147483648
    %v1135 = vmul.f32 %v1134, 1.442695
    %v1136 = vpow.pop %v1135
    %v1137 = vadd.f32 %v1136, 1.0
    %v1138 = vrcp.pop %v1137
    %v1139 = vmul.f32 1.0, %v1138
    %v1140 = vtanh.pop %v1133
    %v1142 = vrot.slane %v1075, 6
    %v1144 = vmul.f32 %v1139, %v1142
    %1146 = vrot.lane.b32.xlu0 %v1140, 64
    %v1147 = vpop.permute.xlu0 %1146
    %v1149 = vmul.f32 %v1139, %v1147
    %1151 = vrot.lane.b32.xlu0 %v1149, 32
    %v1152 = vpop.permute.xlu0 %1151
    %v1154 = vadd.f32 %v1144, %v1152
    %v1155 = vtanh.pop %v1154
    %1157 = vrot.lane.b32.xlu0 %v1155, 64
    %v1158 = vpop.permute.xlu0 %1157
    %v1160 = vmul.f32 %v1139, %v1158
    %v1161 = vpack.c.bf16 %v1160, %v1160
    %v1163 = vrot.slane %v1161, 3
    %1164 = vrot.lane.b32.xlu0 %v1163, 32
    %v1165 = vpop.permute.xlu0 %1164
    %v1167 = vsel %vm147, %v1165, 0
    %1169 = vmatprep.subr.bf16.mxu0 0
    %1170 = vmatpush1.bf16.msra.mxu0 %v789
    %1171 = vmatprep.subr.bf16.mxu0 0
    %1172 = vmatpush1.bf16.msra.mxu0 %v790
    %1173 = vmatprep.subr.bf16.mxu0 0
    %1174 = vmatpush1.bf16.msra.mxu0 0
    %1175 = vmatprep.subr.bf16.mxu0 0
    %1176 = vmatpush1.bf16.msra.mxu0 0
    %1177 = vmatprep.subr.bf16.mxu0 0
    %1178 = vmatpush1.bf16.msra.mxu0 0
    %1179 = vmatprep.subr.bf16.mxu0 0
    %1180 = vmatpush1.bf16.msra.mxu0 0
    %1181 = vmatprep.subr.bf16.mxu0 0
    %1182 = vmatpush1.bf16.msra.mxu0 0
    %1183 = vmatprep.subr.bf16.mxu0 0
    %1184 = vmatpush1.bf16.msra.mxu0 0
    %1185 = vmatprep.subr.bf16.mxu0 0
    %1186 = vmatpush1.bf16.msra.mxu0 0
    %1187 = vmatprep.subr.bf16.mxu0 0
    %1188 = vmatpush1.bf16.msra.mxu0 0
    %1189 = vmatprep.subr.bf16.mxu0 0
    %1190 = vmatpush1.bf16.msra.mxu0 0
    %1191 = vmatprep.subr.bf16.mxu0 0
    %1192 = vmatpush1.bf16.msra.mxu0 0
    %1193 = vmatprep.subr.bf16.mxu0 0
    %1194 = vmatpush1.bf16.msra.mxu0 0
    %1195 = vmatprep.subr.bf16.mxu0 0
    %1196 = vmatpush1.bf16.msra.mxu0 0
    %1197 = vmatprep.subr.bf16.mxu0 0
    %1198 = vmatpush1.bf16.msra.mxu0 0
    %1199 = vmatprep.subr.bf16.mxu0 0
    %1200 = vmatpush1.bf16.msra.mxu0 0
    %1201 = vmatprep.mubr.bf16.mxu0 0
    %1202 = vmatmul.mubr.bf16.gmra.mrb[0].mxu0 %v1167
    %v1203 = vpop.f32.mrb[0].mxu0
    %v1204 = vadd.f32 0.0, %v1203
    %v1205 = vpop.f32.mrb[0].mxu0
    %v1206 = vpop.f32.mrb[0].mxu0
    %v1207 = vpop.f32.mrb[0].mxu0
    %1208 = vdwg.mxu0
    %v1209 = vadd.f32 %v849, %v1204
    %v1210 = vxor.u32 %v1209, 2147483648
    %v1211 = vmul.f32 %v1210, 1.442695
    %v1212 = vpow.pop %v1211
    %v1213 = vadd.f32 %v1212, 1.0
    %v1214 = vrcp.pop %v1213
    %v1215 = vmul.f32 1.0, %v1214
    %v1216 = vtanh.pop %v1209
    %v1218 = vrot.slane %v1154, 6
    %v1220 = vmul.f32 %v1215, %v1218
    %1222 = vrot.lane.b32.xlu0 %v1216, 64
    %v1223 = vpop.permute.xlu0 %1222
    %v1225 = vmul.f32 %v1215, %v1223
    %1227 = vrot.lane.b32.xlu0 %v1225, 32
    %v1228 = vpop.permute.xlu0 %1227
    %v1230 = vadd.f32 %v1220, %v1228
    %v1231 = vtanh.pop %v1230
    %1233 = vrot.lane.b32.xlu0 %v1231, 64
    %v1234 = vpop.permute.xlu0 %1233
    %v1236 = vmul.f32 %v1215, %v1234
    %v1237 = vpack.c.bf16 %v1236, %v1236
    %1239 = vrot.lane.b32.xlu0 %v1237, 32
    %v1240 = vpop.permute.xlu0 %1239
    %v1242 = vsel %vm147, %v1240, 0
    %1244 = vmatprep.subr.bf16.mxu0 0
    %1245 = vmatpush1.bf16.msra.mxu0 %v789
    %1246 = vmatprep.subr.bf16.mxu0 0
    %1247 = vmatpush1.bf16.msra.mxu0 %v790
    %1248 = vmatprep.subr.bf16.mxu0 0
    %1249 = vmatpush1.bf16.msra.mxu0 0
    %1250 = vmatprep.subr.bf16.mxu0 0
    %1251 = vmatpush1.bf16.msra.mxu0 0
    %1252 = vmatprep.subr.bf16.mxu0 0
    %1253 = vmatpush1.bf16.msra.mxu0 0
    %1254 = vmatprep.subr.bf16.mxu0 0
    %1255 = vmatpush1.bf16.msra.mxu0 0
    %1256 = vmatprep.subr.bf16.mxu0 0
    %1257 = vmatpush1.bf16.msra.mxu0 0
    %1258 = vmatprep.subr.bf16.mxu0 0
    %1259 = vmatpush1.bf16.msra.mxu0 0
    %1260 = vmatprep.subr.bf16.mxu0 0
    %1261 = vmatpush1.bf16.msra.mxu0 0
    %1262 = vmatprep.subr.bf16.mxu0 0
    %1263 = vmatpush1.bf16.msra.mxu0 0
    %1264 = vmatprep.subr.bf16.mxu0 0
    %1265 = vmatpush1.bf16.msra.mxu0 0
    %1266 = vmatprep.subr.bf16.mxu0 0
    %1267 = vmatpush1.bf16.msra.mxu0 0
    %1268 = vmatprep.subr.bf16.mxu0 0
    %1269 = vmatpush1.bf16.msra.mxu0 0
    %1270 = vmatprep.subr.bf16.mxu0 0
    %1271 = vmatpush1.bf16.msra.mxu0 0
    %1272 = vmatprep.subr.bf16.mxu0 0
    %1273 = vmatpush1.bf16.msra.mxu0 0
    %1274 = vmatprep.subr.bf16.mxu0 0
    %1275 = vmatpush1.bf16.msra.mxu0 0
    %1276 = vmatprep.mubr.bf16.mxu0 0
    %1277 = vmatmul.mubr.bf16.gmra.mrb[0].mxu0 %v1242
    %v1278 = vpop.f32.mrb[0].mxu0
    %v1279 = vadd.f32 0.0, %v1278
    %v1280 = vpop.f32.mrb[0].mxu0
    %v1281 = vpop.f32.mrb[0].mxu0
    %v1282 = vpop.f32.mrb[0].mxu0
    %1283 = vdwg.mxu0
    %v1285 = vrot.slane %v1279, 6
    %v1287 = vadd.f32 %v849, %v1285
    %v1288 = vxor.u32 %v1287, 2147483648
    %v1289 = vmul.f32 %v1288, 1.442695
    %v1290 = vpow.pop %v1289
    %v1291 = vadd.f32 %v1290, 1.0
    %v1292 = vrcp.pop %v1291
    %v1293 = vmul.f32 1.0, %v1292
    %v1294 = vtanh.pop %v1287
    %v1296 = vrot.slane %v1230, 6
    %v1298 = vmul.f32 %v1293, %v1296
    %1300 = vrot.lane.b32.xlu0 %v1294, 64
    %v1301 = vpop.permute.xlu0 %1300
    %v1303 = vmul.f32 %v1293, %v1301
    %1305 = vrot.lane.b32.xlu0 %v1303, 32
    %v1306 = vpop.permute.xlu0 %1305
    %v1308 = vadd.f32 %v1298, %v1306
    %v1309 = vtanh.pop %v1308
    %1311 = vrot.lane.b32.xlu0 %v1309, 64
    %v1312 = vpop.permute.xlu0 %1311
    %v1314 = vmul.f32 %v1293, %v1312
    %v1315 = vpack.c.bf16 %v1314, %v1314
    %v1317 = vrot.slane %v1315, 1
    %1318 = vrot.lane.b32.xlu0 %v1317, 32
    %v1319 = vpop.permute.xlu0 %1318
    %v1321 = vsel %vm147, %v1319, 0
    %1323 = vmatprep.subr.bf16.mxu0 0
    %1324 = vmatpush1.bf16.msra.mxu0 %v789
    %1325 = vmatprep.subr.bf16.mxu0 0
    %1326 = vmatpush1.bf16.msra.mxu0 %v790
    %1327 = vmatprep.subr.bf16.mxu0 0
    %1328 = vmatpush1.bf16.msra.mxu0 0
    %1329 = vmatprep.subr.bf16.mxu0 0
    %1330 = vmatpush1.bf16.msra.mxu0 0
    %1331 = vmatprep.subr.bf16.mxu0 0
    %1332 = vmatpush1.bf16.msra.mxu0 0
    %1333 = vmatprep.subr.bf16.mxu0 0
    %1334 = vmatpush1.bf16.msra.mxu0 0
    %1335 = vmatprep.subr.bf16.mxu0 0
    %1336 = vmatpush1.bf16.msra.mxu0 0
    %1337 = vmatprep.subr.bf16.mxu0 0
    %1338 = vmatpush1.bf16.msra.mxu0 0
    %1339 = vmatprep.subr.bf16.mxu0 0
    %1340 = vmatpush1.bf16.msra.mxu0 0
    %1341 = vmatprep.subr.bf16.mxu0 0
    %1342 = vmatpush1.bf16.msra.mxu0 0
    %1343 = vmatprep.subr.bf16.mxu0 0
    %1344 = vmatpush1.bf16.msra.mxu0 0
    %1345 = vmatprep.subr.bf16.mxu0 0
    %1346 = vmatpush1.bf16.msra.mxu0 0
    %1347 = vmatprep.subr.bf16.mxu0 0
    %1348 = vmatpush1.bf16.msra.mxu0 0
    %1349 = vmatprep.subr.bf16.mxu0 0
    %1350 = vmatpush1.bf16.msra.mxu0 0
    %1351 = vmatprep.subr.bf16.mxu0 0
    %1352 = vmatpush1.bf16.msra.mxu0 0
    %1353 = vmatprep.subr.bf16.mxu0 0
    %1354 = vmatpush1.bf16.msra.mxu0 0
    %1355 = vmatprep.mubr.bf16.mxu0 0
    %1356 = vmatmul.mubr.bf16.gmra.mrb[0].mxu0 %v1321
    %v1357 = vpop.f32.mrb[0].mxu0
    %v1358 = vadd.f32 0.0, %v1357
    %v1359 = vpop.f32.mrb[0].mxu0
    %v1360 = vpop.f32.mrb[0].mxu0
    %v1361 = vpop.f32.mrb[0].mxu0
    %1362 = vdwg.mxu0
    %v1364 = vrot.slane %v1358, 4
    %v1366 = vadd.f32 %v849, %v1364
    %v1367 = vxor.u32 %v1366, 2147483648
    %v1368 = vmul.f32 %v1367, 1.442695
    %v1369 = vpow.pop %v1368
    %v1370 = vadd.f32 %v1369, 1.0
    %v1371 = vrcp.pop %v1370
    %v1372 = vmul.f32 1.0, %v1371
    %v1373 = vtanh.pop %v1366
    %v1375 = vrot.slane %v1308, 6
    %v1377 = vmul.f32 %v1372, %v1375
    %1379 = vrot.lane.b32.xlu0 %v1373, 64
    %v1380 = vpop.permute.xlu0 %1379
    %v1382 = vmul.f32 %v1372, %v1380
    %1384 = vrot.lane.b32.xlu0 %v1382, 32
    %v1385 = vpop.permute.xlu0 %1384
    %v1387 = vadd.f32 %v1377, %v1385
    %v1388 = vtanh.pop %v1387
    %1390 = vrot.lane.b32.xlu0 %v1388, 64
    %v1391 = vpop.permute.xlu0 %1390
    %v1393 = vmul.f32 %v1372, %v1391
    %v1394 = vpack.c.bf16 %v1393, %v1393
    %v1396 = vrot.slane %v1394, 2
    %1397 = vrot.lane.b32.xlu0 %v1396, 32
    %v1398 = vpop.permute.xlu0 %1397
    %v1400 = vsel %vm147, %v1398, 0
    %1402 = vmatprep.subr.bf16.mxu0 0
    %1403 = vmatpush1.bf16.msra.mxu0 %v789
    %1404 = vmatprep.subr.bf16.mxu0 0
    %1405 = vmatpush1.bf16.msra.mxu0 %v790
    %1406 = vmatprep.subr.bf16.mxu0 0
    %1407 = vmatpush1.bf16.msra.mxu0 0
    %1408 = vmatprep.subr.bf16.mxu0 0
    %1409 = vmatpush1.bf16.msra.mxu0 0
    %1410 = vmatprep.subr.bf16.mxu0 0
    %1411 = vmatpush1.bf16.msra.mxu0 0
    %1412 = vmatprep.subr.bf16.mxu0 0
    %1413 = vmatpush1.bf16.msra.mxu0 0
    %1414 = vmatprep.subr.bf16.mxu0 0
    %1415 = vmatpush1.bf16.msra.mxu0 0
    %1416 = vmatprep.subr.bf16.mxu0 0
    %1417 = vmatpush1.bf16.msra.mxu0 0
    %1418 = vmatprep.subr.bf16.mxu0 0
    %1419 = vmatpush1.bf16.msra.mxu0 0
    %1420 = vmatprep.subr.bf16.mxu0 0
    %1421 = vmatpush1.bf16.msra.mxu0 0
    %1422 = vmatprep.subr.bf16.mxu0 0
    %1423 = vmatpush1.bf16.msra.mxu0 0
    %1424 = vmatprep.subr.bf16.mxu0 0
    %1425 = vmatpush1.bf16.msra.mxu0 0
    %1426 = vmatprep.subr.bf16.mxu0 0
    %1427 = vmatpush1.bf16.msra.mxu0 0
    %1428 = vmatprep.subr.bf16.mxu0 0
    %1429 = vmatpush1.bf16.msra.mxu0 0
    %1430 = vmatprep.subr.bf16.mxu0 0
    %1431 = vmatpush1.bf16.msra.mxu0 0
    %1432 = vmatprep.subr.bf16.mxu0 0
    %1433 = vmatpush1.bf16.msra.mxu0 0
    %1434 = vmatprep.mubr.bf16.mxu0 0
    %1435 = vmatmul.mubr.bf16.gmra.mrb[0].mxu0 %v1400
    %v1436 = vpop.f32.mrb[0].mxu0
    %v1437 = vadd.f32 0.0, %v1436
    %v1438 = vpop.f32.mrb[0].mxu0
    %v1439 = vpop.f32.mrb[0].mxu0
    %v1440 = vpop.f32.mrb[0].mxu0
    %1441 = vdwg.mxu0
    %v1443 = vrot.slane %v1437, 2
    %v1445 = vadd.f32 %v849, %v1443
    %v1446 = vxor.u32 %v1445, 2147483648
    %v1447 = vmul.f32 %v1446, 1.442695
    %v1448 = vpow.pop %v1447
    %v1449 = vadd.f32 %v1448, 1.0
    %v1450 = vrcp.pop %v1449
    %v1451 = vmul.f32 1.0, %v1450
    %v1452 = vtanh.pop %v1445
    %v1454 = vrot.slane %v1387, 6
    %v1456 = vmul.f32 %v1451, %v1454
    %1458 = vrot.lane.b32.xlu0 %v1452, 64
    %v1459 = vpop.permute.xlu0 %1458
    %v1461 = vmul.f32 %v1451, %v1459
    %1463 = vrot.lane.b32.xlu0 %v1461, 32
    %v1464 = vpop.permute.xlu0 %1463
    %v1466 = vadd.f32 %v1456, %v1464
    %v1467 = vtanh.pop %v1466
    %1469 = vrot.lane.b32.xlu0 %v1467, 64
    %v1470 = vpop.permute.xlu0 %1469
    %v1472 = vmul.f32 %v1451, %v1470
    %1474 = vrot.lane.b32.xlu0 %v1472, 32
    %v1475 = vpop.permute.xlu0 %1474
    %s1477 = scalar_lea.vmem %s6, 2
    %1478 = vst.msk [vmem:[%s1477 - $0x6] sm:$0xc0] %vm772, %v1475
    %1480 = vrot.lane.b32.xlu0 %v1466, 96
    %v1481 = vpop.permute.xlu0 %1480
    %s1483 = scalar_lea.vmem %s7, 2
    %1484 = vst.msk [vmem:[%s1483 - $0x6] sm:$0xc0] %vm772, %v1481
    %v1485 = vld [vmem:[#allocation4 + $0x48] sm:$0x1]
    %v1486 = vlaneseq
    %v1487 = vshrl.u32 %v1486, 7
    %v1488 = vsub.s32 0, %v1487
    %v1489 = vrot.slane %v1485, %v1488
    %1491 = vrot.lane.b32.xlu0 %v1489, 96
    %v1492 = vpop.permute.xlu0 %1491
    %v1494 = vmul.f32 %v1472, %v1492
    %1496 = vrot.lane.b32.xlu0 %v1494, 32
    %v1497 = vpop.permute.xlu0 %1496
    %v1499 = vsel %vm772, %v1497, 0.0
    %1500 = vadd.xlane.f32.xlu0 %v1499
    %v1501 = vpop.xlane.xlu0 %1500
    %v1502 = vadd.f32 %v1501, %v1489
    %v1503 = vxor.u32 %v1502, 2147483648
    %v1504 = vmul.f32 %v1503, 1.442695
    %v1505 = vpow.pop %v1504
    %v1506 = vadd.f32 %v1505, 1.0
    %v1507 = vrcp.pop %v1506
    %v1508 = vmul.f32 1.0, %v1507
    %1510 = vrot.lane.b32.xlu0 %v1508, 96
    %v1511 = vpop.permute.xlu0 %1510
    %vm1513 = vcmask 7174
    %1514 = vst.msk [vmem:[%s5 - $0x6] sm:$0xc0] %vm1513, %v1511
    // Predicated region
    $region30: #{sentiment_lstm_forward.1} parent=1 // pred_check
      _
    $region31: #{sentiment_lstm_forward.1} parent=1 // pred_check_branch
      %1516 = sbr.rel (0) target = $region33
    $region32: #{sentiment_lstm_forward.1} parent=1 // pred_region
      _
    $region33: #{sentiment_lstm_forward.1} parent=1 // pred_fallthru
      _
    // Predicated region
    $region34: #{sentiment_lstm_forward.1} parent=1 // pred_check
      _
    $region35: #{sentiment_lstm_forward.1} parent=1 // pred_check_branch
      %1518 = sbr.rel (0) target = $region37
    $region36: #{sentiment_lstm_forward.1} parent=1 // pred_region
      _
    $region37: #{sentiment_lstm_forward.1} parent=1 // pred_fallthru
      _
    // Predicated region
    $region38: #{sentiment_lstm_forward.1} parent=1 // pred_check
      _
    $region39: #{sentiment_lstm_forward.1} parent=1 // pred_check_branch
      %1520 = sbr.rel (0) target = $region41
    $region40: #{sentiment_lstm_forward.1} parent=1 // pred_region
      _
    $region41: #{sentiment_lstm_forward.1} parent=1 // pred_fallthru
      _
    // Predicated region
    $region42: #{sentiment_lstm_forward.1} parent=1 // pred_check
      _
    $region43: #{sentiment_lstm_forward.1} parent=1 // pred_check_branch
      %1522 = sbr.rel (0) target = $region45
    $region44: #{sentiment_lstm_forward.1} parent=1 // pred_region
      _
    $region45: #{sentiment_lstm_forward.1} parent=1 // pred_fallthru
      _
    // Predicated region
    $region46: #{sentiment_lstm_forward.1} parent=1 // pred_check
      _
    $region47: #{sentiment_lstm_forward.1} parent=1 // pred_check_branch
      %1524 = sbr.rel (0) target = $region49
    $region48: #{sentiment_lstm_forward.1} parent=1 // pred_region
      _
    $region49: #{sentiment_lstm_forward.1} parent=1 // pred_fallthru
      _
    // Predicated region
    $region50: #{sentiment_lstm_forward.1} parent=1 // pred_check
      _
    $region51: #{sentiment_lstm_forward.1} parent=1 // pred_check_branch
      %1526 = sbr.rel (0) target = $region53
    $region52: #{sentiment_lstm_forward.1} parent=1 // pred_region
      _
    $region53: #{sentiment_lstm_forward.1} parent=1 // pred_fallthru
      _
    %1527 = vsyncpa [#allocation3], 1
    %1528 = vsyncpa [#allocation5], 1

</llo_original>
